<compile_context>
chip_gen: v5e
topology: v5e:2x2
jax: 0.10.0
libtpu: 0.0.40
codegen_flags: <defaults>
</compile_context>

<pallas_src>
import math

import jax
import jax.numpy as jnp
from jax.experimental import pallas as pl
from jax.experimental.pallas import tpu as pltpu

# ---- model configuration (small, consistent with a BERT encoder) ----------
NUM_HEADS = 4
HEAD_DIM = 8
HIDDEN = NUM_HEADS * HEAD_DIM          # 32
INTERMEDIATE = 4 * HIDDEN              # 128
NUM_LAYERS = 2
LN_EPS = 1e-12
# stand-in for float('-inf'); exp() of it underflows to exactly 0 in the
# softmax, matching PyTorch -inf masking semantics without inf arithmetic.
NEG_INF = -1e30
_SCALE = 1.0 / math.sqrt(HEAD_DIM)
MATMUL_DTYPE = jnp.bfloat16            # MXU operand dtype; accumulate in f32

_WEIGHT_NAMES = ("wqkv", "bqkv", "wo", "bo", "ln1_g", "ln1_b",
                 "wi", "bi", "wf", "bf", "ln2_g", "ln2_b")


# ---------------------------------------------------------------------------
# Shared encoder math (used by both the Pallas kernel and the pure-JAX ref).
# ---------------------------------------------------------------------------
def _layer_norm(x, g, b):
    mu = jnp.mean(x, axis=-1, keepdims=True)
    var = jnp.mean(jnp.square(x - mu), axis=-1, keepdims=True)
    return (x - mu) * jax.lax.rsqrt(var + LN_EPS) * g + b


def _encoder_stack(hidden_btd, mask_btt, w, recip):
    """hidden_btd: (B,T,H) f32.  mask_btt: (B,T,T) f32 additive.
    w: dict of per-layer-stacked weights (leading dim NUM_LAYERS; matmul
    weights in MATMUL_DTYPE, biases/LN params f32).  recip: 1/x function."""
    B, T, H = hidden_btd.shape
    xf = hidden_btd.reshape(B * T, H)                      # token-major (BT, H) f32
    for l in range(NUM_LAYERS):                            # static: both layers fused
        # fused QKV projection: one (BT,H)x(H,3H) matmul, bf16 in / f32 acc
        qkv = jnp.dot(xf.astype(MATMUL_DTYPE), w["wqkv"][l],
                      preferred_element_type=jnp.float32) + w["bqkv"][l]
        q = qkv[:, :H] * _SCALE                            # fold 1/sqrt(d) into q once
        k = qkv[:, H:2 * H]
        v = qkv[:, 2 * H:]
        ctx_parts = []
        for h in range(NUM_HEADS):                         # static unroll over heads
            lo = h * HEAD_DIM
            qh = q[:, lo:lo + HEAD_DIM].reshape(B, T, HEAD_DIM).astype(MATMUL_DTYPE)
            kh = k[:, lo:lo + HEAD_DIM].reshape(B, T, HEAD_DIM).astype(MATMUL_DTYPE)
            vh = v[:, lo:lo + HEAD_DIM].reshape(B, T, HEAD_DIM).astype(MATMUL_DTYPE)
            # batched over B, contraction on last dim -> no explicit k transpose
            s = jnp.einsum("btd,bsd->bts", qh, kh,
                           preferred_element_type=jnp.float32) + mask_btt
            s = s - jnp.max(s, axis=-1, keepdims=True)
            p = jnp.exp(s)
            p = p * recip(jnp.sum(p, axis=-1, keepdims=True))
            ctx_parts.append(jnp.einsum("bts,bsd->btd", p.astype(MATMUL_DTYPE), vh,
                                        preferred_element_type=jnp.float32))
        ctx = jnp.concatenate(ctx_parts, axis=-1).reshape(B * T, H)
        attn = jnp.dot(ctx.astype(MATMUL_DTYPE), w["wo"][l],
                       preferred_element_type=jnp.float32) + w["bo"][l]
        h1 = _layer_norm(xf + attn, w["ln1_g"][l], w["ln1_b"][l])
        # TODO(synk): HF BERT default is exact erf GELU; tanh approximation kept
        # (erf has no clean Mosaic lowering) -- consistent with the reference.
        ff = jax.nn.gelu(jnp.dot(h1.astype(MATMUL_DTYPE), w["wi"][l],
                                 preferred_element_type=jnp.float32) + w["bi"][l],
                         approximate=True)
        ffo = jnp.dot(ff.astype(MATMUL_DTYPE), w["wf"][l],
                      preferred_element_type=jnp.float32) + w["bf"][l]
        xf = _layer_norm(h1 + ffo, w["ln2_g"][l], w["ln2_b"][l])
    return xf.reshape(B, T, H)


# ---------------------------------------------------------------------------
# Pallas kernel: whole batch, both layers, one invocation, everything in VMEM.
# ---------------------------------------------------------------------------
def encoder_kernel(hidden_ref, base_mask_ref, pad_ref, *wrefs_and_out):
    *wrefs, out_ref = wrefs_and_out
    w = {name: ref[...] for name, ref in zip(_WEIGHT_NAMES, wrefs)}

    hidden = hidden_ref[...]                               # (B, T, H) f32
    T = hidden.shape[1]
    Tt = out_ref.shape[1]
    Tm = T - Tt

    # Build the (B, T, T) additive mask in VMEM -- it is never read from HBM.
    mask = base_mask_ref[...][None, :, :] + pad_ref[...][:, None, :]

    y = _encoder_stack(hidden, mask, w,
                       lambda d: pl.reciprocal(d, approx=True))
    out_ref[...] = y[:, Tm:, :]                            # only the tgt part


# ---------------------------------------------------------------------------
# BertEncoderAsDecoder.forward (mask prep is cheap glue; encoder runs fused
# inside one Pallas kernel).
# ---------------------------------------------------------------------------
def bert_encoder_as_decoder_forward(params, tgt, memory, tgt_mask,
                                    memory_key_padding_mask=None,
                                    tgt_bi_valid_mask=None,
                                    encoder_history_states=None):
    assert tgt_mask.ndim == 2 and tgt_mask.shape[0] == tgt_mask.shape[1]
    # TODO(synk): tgt_bi_valid_mask scatter branch not implemented.
    assert tgt_bi_valid_mask is None
    # TODO(synk): encoder_history_states (incremental decoding) not implemented.
    assert encoder_history_states is None

    tgt_btd = jnp.transpose(tgt, (1, 0, 2)).astype(jnp.float32)      # (B, Tt, H)
    mem_btd = jnp.transpose(memory, (1, 0, 2)).astype(jnp.float32)   # (B, Tm, H)
    hidden = jnp.concatenate([mem_btd, tgt_btd], axis=1)             # (B, T, H)
    B, Tm, H = mem_btd.shape
    Tt = tgt_btd.shape[1]
    T = Tm + Tt

    # (T, T) structural mask (batch independent) + (B, T) padding row; the full
    # (B, T, T) mask is constructed inside the kernel.
    base_mask = jnp.concatenate([
        jnp.zeros((T, Tm), jnp.float32),
        jnp.concatenate([jnp.full((Tm, Tt), NEG_INF, jnp.float32),
                         tgt_mask.astype(jnp.float32)], axis=0)], axis=1)
    if memory_key_padding_mask is None:
        memory_key_padding_mask = jnp.zeros((B, Tm), dtype=bool)
    assert memory_key_padding_mask.dtype == jnp.bool_
    pad_add = jnp.where(memory_key_padding_mask, NEG_INF, 0.0).astype(jnp.float32)
    pad_full = jnp.concatenate([pad_add, jnp.zeros((B, Tt), jnp.float32)], axis=1)

    flat_w = [params[name] for name in _WEIGHT_NAMES]
    n_in = 3 + len(flat_w)
    out = pl.pallas_call(
        encoder_kernel,
        out_shape=jax.ShapeDtypeStruct((B, Tt, H), jnp.float32),
        in_specs=[pl.BlockSpec(memory_space=pltpu.MemorySpace.VMEM)] * n_in,
        out_specs=pl.BlockSpec(memory_space=pltpu.MemorySpace.VMEM),
    )(hidden, base_mask, pad_full, *flat_w)
    return jnp.transpose(out, (1, 0, 2))                   # (Tt, B, H)


# ---------------------------------------------------------------------------
# Pure-JAX reference (identical math via _encoder_stack, exact reciprocal).
# ---------------------------------------------------------------------------
def reference_forward(params, tgt, memory, tgt_mask, memory_key_padding_mask=None):
    tgt_btd = jnp.transpose(tgt, (1, 0, 2)).astype(jnp.float32)
    mem_btd = jnp.transpose(memory, (1, 0, 2)).astype(jnp.float32)
    hidden = jnp.concatenate([mem_btd, tgt_btd], axis=1)
    B, Tm, H = mem_btd.shape
    Tt = tgt_btd.shape[1]
    T = Tm + Tt
    base_mask = jnp.concatenate([
        jnp.zeros((T, Tm), jnp.float32),
        jnp.concatenate([jnp.full((Tm, Tt), NEG_INF, jnp.float32),
                         tgt_mask.astype(jnp.float32)], axis=0)], axis=1)
    if memory_key_padding_mask is None:
        memory_key_padding_mask = jnp.zeros((B, Tm), dtype=bool)
    pad_add = jnp.where(memory_key_padding_mask, NEG_INF, 0.0).astype(jnp.float32)
    pad_full = jnp.concatenate([pad_add, jnp.zeros((B, Tt), jnp.float32)], axis=1)
    mask = base_mask[None, :, :] + pad_full[:, None, :]
    y = _encoder_stack(hidden, mask, params, lambda d: 1.0 / d)
    return jnp.transpose(y[:, Tm:, :], (1, 0, 2))


# ---------------------------------------------------------------------------
def init_params(key):
    wqkv, wo, wi, wf = [], [], [], []
    for layer in range(NUM_LAYERS):
        lk = jax.random.fold_in(key, layer)
        ks = jax.random.split(lk, 6)
        nrm = lambda k, s: 0.02 * jax.random.normal(k, s, jnp.float32)
        wq = nrm(ks[0], (HIDDEN, HIDDEN))
        wk = nrm(ks[1], (HIDDEN, HIDDEN))
        wv = nrm(ks[2], (HIDDEN, HIDDEN))
        wqkv.append(jnp.concatenate([wq, wk, wv], axis=1))   # fused (H, 3H)
        wo.append(nrm(ks[3], (HIDDEN, HIDDEN)))
        wi.append(nrm(ks[4], (HIDDEN, INTERMEDIATE)))
        wf.append(nrm(ks[5], (INTERMEDIATE, HIDDEN)))
    return dict(
        wqkv=jnp.stack(wqkv).astype(MATMUL_DTYPE),
        bqkv=jnp.zeros((NUM_LAYERS, 1, 3 * HIDDEN), jnp.float32),
        wo=jnp.stack(wo).astype(MATMUL_DTYPE),
        bo=jnp.zeros((NUM_LAYERS, 1, HIDDEN), jnp.float32),
        ln1_g=jnp.ones((NUM_LAYERS, 1, HIDDEN), jnp.float32),
        ln1_b=jnp.zeros((NUM_LAYERS, 1, HIDDEN), jnp.float32),
        wi=jnp.stack(wi).astype(MATMUL_DTYPE),
        bi=jnp.zeros((NUM_LAYERS, 1, INTERMEDIATE), jnp.float32),
        wf=jnp.stack(wf).astype(MATMUL_DTYPE),
        bf=jnp.zeros((NUM_LAYERS, 1, HIDDEN), jnp.float32),
        ln2_g=jnp.ones((NUM_LAYERS, 1, HIDDEN), jnp.float32),
        ln2_b=jnp.zeros((NUM_LAYERS, 1, HIDDEN), jnp.float32),
    )


if __name__ == "__main__":
    B, Tt, Tm = 2, 8, 8
    key = jax.random.PRNGKey(0)
    kp, kt, km = jax.random.split(key, 3)

    params = init_params(kp)
    tgt = jax.random.normal(kt, (Tt, B, HIDDEN), jnp.float32)      # (seq, batch, hidden)
    memory = jax.random.normal(km, (Tm, B, HIDDEN), jnp.float32)   # (seq, batch, hidden)
    # causal additive target mask (0 on/below diagonal, -inf above)
    causal = jnp.tril(jnp.ones((Tt, Tt), dtype=bool))
    tgt_mask = jnp.where(causal, 0.0, NEG_INF).astype(jnp.float32)
    # exercise the memory_key_padding_mask path: mask the last two memory
    # positions of batch element 1 (no row ends up fully masked).
    mem_pad = jnp.zeros((B, Tm), dtype=bool).at[1, Tm - 2:].set(True)

    out = bert_encoder_as_decoder_forward(params, tgt, memory, tgt_mask,
                                          memory_key_padding_mask=mem_pad)
    out = jax.block_until_ready(out)

    ref = jax.block_until_ready(
        reference_forward(params, tgt, memory, tgt_mask, mem_pad))
    assert out.shape == (Tt, B, HIDDEN), out.shape
    assert not bool(jnp.any(jnp.isnan(out)))
    err = float(jnp.max(jnp.abs(out - ref)))
    assert bool(jnp.allclose(out, ref, rtol=1e-2, atol=1e-2)), err

    print("KERNEL_OK")
</pallas_src>

<mosaic_0001>
module attributes {stable_mosaic.version = 11 : i64} {
  func.func @encoder_kernel(%arg0: memref<2x16x32xf32, #tpu.memory_space<vmem>>, %arg1: memref<16x16xf32, #tpu.memory_space<vmem>>, %arg2: memref<2x16xf32, #tpu.memory_space<vmem>>, %arg3: memref<2x32x96xbf16, #tpu.memory_space<vmem>>, %arg4: memref<2x1x96xf32, #tpu.memory_space<vmem>>, %arg5: memref<2x32x32xbf16, #tpu.memory_space<vmem>>, %arg6: memref<2x1x32xf32, #tpu.memory_space<vmem>>, %arg7: memref<2x1x32xf32, #tpu.memory_space<vmem>>, %arg8: memref<2x1x32xf32, #tpu.memory_space<vmem>>, %arg9: memref<2x32x128xbf16, #tpu.memory_space<vmem>>, %arg10: memref<2x1x128xf32, #tpu.memory_space<vmem>>, %arg11: memref<2x128x32xbf16, #tpu.memory_space<vmem>>, %arg12: memref<2x1x32xf32, #tpu.memory_space<vmem>>, %arg13: memref<2x1x32xf32, #tpu.memory_space<vmem>>, %arg14: memref<2x1x32xf32, #tpu.memory_space<vmem>>, %arg15: memref<2x8x32xf32, #tpu.memory_space<vmem>>) attributes {dimension_semantics = [], scalar_prefetch = 0 : i64, scratch_operands = 0 : i64, tpu.core_type = #tpu.core_type<tc>} {
    %c0 = arith.constant 0 : index
    %c0_0 = arith.constant 0 : index
    %c0_1 = arith.constant 0 : index
    %0 = vector.load %arg3[%c0, %c0_0, %c0_1] : memref<2x32x96xbf16, #tpu.memory_space<vmem>>, vector<2x32x96xbf16>
    %c0_2 = arith.constant 0 : index
    %c0_3 = arith.constant 0 : index
    %c0_4 = arith.constant 0 : index
    %1 = vector.load %arg4[%c0_2, %c0_3, %c0_4] : memref<2x1x96xf32, #tpu.memory_space<vmem>>, vector<2x1x96xf32>
    %c0_5 = arith.constant 0 : index
    %c0_6 = arith.constant 0 : index
    %c0_7 = arith.constant 0 : index
    %2 = vector.load %arg5[%c0_5, %c0_6, %c0_7] : memref<2x32x32xbf16, #tpu.memory_space<vmem>>, vector<2x32x32xbf16>
    %c0_8 = arith.constant 0 : index
    %c0_9 = arith.constant 0 : index
    %c0_10 = arith.constant 0 : index
    %3 = vector.load %arg6[%c0_8, %c0_9, %c0_10] : memref<2x1x32xf32, #tpu.memory_space<vmem>>, vector<2x1x32xf32>
    %c0_11 = arith.constant 0 : index
    %c0_12 = arith.constant 0 : index
    %c0_13 = arith.constant 0 : index
    %4 = vector.load %arg7[%c0_11, %c0_12, %c0_13] : memref<2x1x32xf32, #tpu.memory_space<vmem>>, vector<2x1x32xf32>
    %c0_14 = arith.constant 0 : index
    %c0_15 = arith.constant 0 : index
    %c0_16 = arith.constant 0 : index
    %5 = vector.load %arg8[%c0_14, %c0_15, %c0_16] : memref<2x1x32xf32, #tpu.memory_space<vmem>>, vector<2x1x32xf32>
    %c0_17 = arith.constant 0 : index
    %c0_18 = arith.constant 0 : index
    %c0_19 = arith.constant 0 : index
    %6 = vector.load %arg9[%c0_17, %c0_18, %c0_19] : memref<2x32x128xbf16, #tpu.memory_space<vmem>>, vector<2x32x128xbf16>
    %c0_20 = arith.constant 0 : index
    %c0_21 = arith.constant 0 : index
    %c0_22 = arith.constant 0 : index
    %7 = vector.load %arg10[%c0_20, %c0_21, %c0_22] : memref<2x1x128xf32, #tpu.memory_space<vmem>>, vector<2x1x128xf32>
    %c0_23 = arith.constant 0 : index
    %c0_24 = arith.constant 0 : index
    %c0_25 = arith.constant 0 : index
    %8 = vector.load %arg11[%c0_23, %c0_24, %c0_25] : memref<2x128x32xbf16, #tpu.memory_space<vmem>>, vector<2x128x32xbf16>
    %c0_26 = arith.constant 0 : index
    %c0_27 = arith.constant 0 : index
    %c0_28 = arith.constant 0 : index
    %9 = vector.load %arg12[%c0_26, %c0_27, %c0_28] : memref<2x1x32xf32, #tpu.memory_space<vmem>>, vector<2x1x32xf32>
    %c0_29 = arith.constant 0 : index
    %c0_30 = arith.constant 0 : index
    %c0_31 = arith.constant 0 : index
    %10 = vector.load %arg13[%c0_29, %c0_30, %c0_31] : memref<2x1x32xf32, #tpu.memory_space<vmem>>, vector<2x1x32xf32>
    %c0_32 = arith.constant 0 : index
    %c0_33 = arith.constant 0 : index
    %c0_34 = arith.constant 0 : index
    %11 = vector.load %arg14[%c0_32, %c0_33, %c0_34] : memref<2x1x32xf32, #tpu.memory_space<vmem>>, vector<2x1x32xf32>
    %c0_35 = arith.constant 0 : index
    %c0_36 = arith.constant 0 : index
    %c0_37 = arith.constant 0 : index
    %12 = vector.load %arg0[%c0_35, %c0_36, %c0_37] : memref<2x16x32xf32, #tpu.memory_space<vmem>>, vector<2x16x32xf32>
    %c0_38 = arith.constant 0 : index
    %c0_39 = arith.constant 0 : index
    %13 = vector.load %arg1[%c0_38, %c0_39] : memref<16x16xf32, #tpu.memory_space<vmem>>, vector<16x16xf32>
    %14 = vector.shape_cast %13 : vector<16x16xf32> to vector<1x16x16xf32>
    %c0_40 = arith.constant 0 : index
    %c0_41 = arith.constant 0 : index
    %15 = vector.load %arg2[%c0_40, %c0_41] : memref<2x16xf32, #tpu.memory_space<vmem>>, vector<2x16xf32>
    %16 = vector.shape_cast %15 : vector<2x16xf32> to vector<2x1x16xf32>
    %17 = vector.broadcast %14 : vector<1x16x16xf32> to vector<2x16x16xf32>
    %18 = vector.broadcast %16 : vector<2x1x16xf32> to vector<2x16x16xf32>
    %19 = arith.addf %17, %18 : vector<2x16x16xf32>
    %20 = vector.shape_cast %12 : vector<2x16x32xf32> to vector<32x32xf32>
    %21 = arith.truncf %20 : vector<32x32xf32> to vector<32x32xbf16>
    %22 = vector.extract_strided_slice %0 {offsets = [0, 0, 0], sizes = [1, 32, 96], strides = [1, 1, 1]} : vector<2x32x96xbf16> to vector<1x32x96xbf16>
    %23 = vector.shape_cast %22 : vector<1x32x96xbf16> to vector<32x96xbf16>
    %cst = arith.constant dense<0.000000e+00> : vector<32x96xf32>
    %24 = tpu.matmul %21, %23, %cst {dimension_numbers = #tpu.dot_dimension_numbers<[1], [0], [0], [1], [0, 0, 1, 1], [], []>} : vector<32x32xbf16>, vector<32x96xbf16>, vector<32x96xf32> -> vector<32x96xf32>
    %25 = vector.extract_strided_slice %1 {offsets = [0, 0, 0], sizes = [1, 1, 96], strides = [1, 1, 1]} : vector<2x1x96xf32> to vector<1x1x96xf32>
    %26 = vector.shape_cast %25 : vector<1x1x96xf32> to vector<1x96xf32>
    %27 = vector.broadcast %26 : vector<1x96xf32> to vector<32x96xf32>
    %28 = arith.addf %24, %27 : vector<32x96xf32>
    %29 = vector.extract_strided_slice %28 {offsets = [0, 0], sizes = [32, 32], strides = [1, 1]} : vector<32x96xf32> to vector<32x32xf32>
    %cst_42 = arith.constant 0.353553385 : f32
    %30 = vector.broadcast %cst_42 : f32 to vector<32x32xf32>
    %31 = arith.mulf %29, %30 : vector<32x32xf32>
    %32 = vector.extract_strided_slice %28 {offsets = [0, 32], sizes = [32, 32], strides = [1, 1]} : vector<32x96xf32> to vector<32x32xf32>
    %33 = vector.extract_strided_slice %28 {offsets = [0, 64], sizes = [32, 32], strides = [1, 1]} : vector<32x96xf32> to vector<32x32xf32>
    %34 = vector.extract_strided_slice %31 {offsets = [0, 0], sizes = [32, 8], strides = [1, 1]} : vector<32x32xf32> to vector<32x8xf32>
    %35 = vector.shape_cast %34 : vector<32x8xf32> to vector<2x16x8xf32>
    %36 = arith.truncf %35 : vector<2x16x8xf32> to vector<2x16x8xbf16>
    %37 = vector.extract_strided_slice %32 {offsets = [0, 0], sizes = [32, 8], strides = [1, 1]} : vector<32x32xf32> to vector<32x8xf32>
    %38 = vector.shape_cast %37 : vector<32x8xf32> to vector<2x16x8xf32>
    %39 = arith.truncf %38 : vector<2x16x8xf32> to vector<2x16x8xbf16>
    %40 = vector.extract_strided_slice %33 {offsets = [0, 0], sizes = [32, 8], strides = [1, 1]} : vector<32x32xf32> to vector<32x8xf32>
    %41 = vector.shape_cast %40 : vector<32x8xf32> to vector<2x16x8xf32>
    %42 = arith.truncf %41 : vector<2x16x8xf32> to vector<2x16x8xbf16>
    "tpu.trace_start"() <{level = 10 : i32, message = "btd,bsd->bts"}> : () -> ()
    %cst_43 = arith.constant dense<0.000000e+00> : vector<2x16x16xf32>
    %43 = tpu.matmul %36, %39, %cst_43 {dimension_numbers = #tpu.dot_dimension_numbers<[2], [2], [1], [1], [0, 0, 0, 1, 1, 1], [0], [0]>} : vector<2x16x8xbf16>, vector<2x16x8xbf16>, vector<2x16x16xf32> -> vector<2x16x16xf32>
    "tpu.trace_stop"() : () -> ()
    %44 = arith.addf %43, %19 : vector<2x16x16xf32>
    %cst_44 = arith.constant dense<0xFF800000> : vector<2x16xf32>
    %45 = vector.multi_reduction <maximumf>, %44, %cst_44 [2] : vector<2x16x16xf32> to vector<2x16xf32>
    %46 = vector.shape_cast %45 : vector<2x16xf32> to vector<2x16x1xf32>
    %47 = vector.broadcast %46 : vector<2x16x1xf32> to vector<2x16x16xf32>
    %48 = arith.subf %44, %47 : vector<2x16x16xf32>
    %49 = math.exp %48 : vector<2x16x16xf32>
    %cst_45 = arith.constant dense<0.000000e+00> : vector<2x16xf32>
    %50 = vector.multi_reduction <add>, %49, %cst_45 [2] : vector<2x16x16xf32> to vector<2x16xf32>
    %51 = vector.shape_cast %50 : vector<2x16xf32> to vector<2x16x1xf32>
    %52 = tpu.reciprocal %51 {approx = true} : vector<2x16x1xf32> -> vector<2x16x1xf32>
    %53 = vector.broadcast %52 : vector<2x16x1xf32> to vector<2x16x16xf32>
    %54 = arith.mulf %49, %53 : vector<2x16x16xf32>
    %55 = arith.truncf %54 : vector<2x16x16xf32> to vector<2x16x16xbf16>
    "tpu.trace_start"() <{level = 10 : i32, message = "bts,bsd->btd"}> : () -> ()
    %cst_46 = arith.constant dense<0.000000e+00> : vector<2x16x8xf32>
    %56 = tpu.matmul %55, %42, %cst_46 {dimension_numbers = #tpu.dot_dimension_numbers<[2], [1], [1], [2], [0, 0, 0, 1, 1, 2], [0], [0]>} : vector<2x16x16xbf16>, vector<2x16x8xbf16>, vector<2x16x8xf32> -> vector<2x16x8xf32>
    "tpu.trace_stop"() : () -> ()
    %57 = vector.extract_strided_slice %31 {offsets = [0, 8], sizes = [32, 8], strides = [1, 1]} : vector<32x32xf32> to vector<32x8xf32>
    %58 = vector.shape_cast %57 : vector<32x8xf32> to vector<2x16x8xf32>
    %59 = arith.truncf %58 : vector<2x16x8xf32> to vector<2x16x8xbf16>
    %60 = vector.extract_strided_slice %32 {offsets = [0, 8], sizes = [32, 8], strides = [1, 1]} : vector<32x32xf32> to vector<32x8xf32>
    %61 = vector.shape_cast %60 : vector<32x8xf32> to vector<2x16x8xf32>
    %62 = arith.truncf %61 : vector<2x16x8xf32> to vector<2x16x8xbf16>
    %63 = vector.extract_strided_slice %33 {offsets = [0, 8], sizes = [32, 8], strides = [1, 1]} : vector<32x32xf32> to vector<32x8xf32>
    %64 = vector.shape_cast %63 : vector<32x8xf32> to vector<2x16x8xf32>
    %65 = arith.truncf %64 : vector<2x16x8xf32> to vector<2x16x8xbf16>
    "tpu.trace_start"() <{level = 10 : i32, message = "btd,bsd->bts"}> : () -> ()
    %cst_47 = arith.constant dense<0.000000e+00> : vector<2x16x16xf32>
    %66 = tpu.matmul %59, %62, %cst_47 {dimension_numbers = #tpu.dot_dimension_numbers<[2], [2], [1], [1], [0, 0, 0, 1, 1, 1], [0], [0]>} : vector<2x16x8xbf16>, vector<2x16x8xbf16>, vector<2x16x16xf32> -> vector<2x16x16xf32>
    "tpu.trace_stop"() : () -> ()
    %67 = arith.addf %66, %19 : vector<2x16x16xf32>
    %cst_48 = arith.constant dense<0xFF800000> : vector<2x16xf32>
    %68 = vector.multi_reduction <maximumf>, %67, %cst_48 [2] : vector<2x16x16xf32> to vector<2x16xf32>
    %69 = vector.shape_cast %68 : vector<2x16xf32> to vector<2x16x1xf32>
    %70 = vector.broadcast %69 : vector<2x16x1xf32> to vector<2x16x16xf32>
    %71 = arith.subf %67, %70 : vector<2x16x16xf32>
    %72 = math.exp %71 : vector<2x16x16xf32>
    %cst_49 = arith.constant dense<0.000000e+00> : vector<2x16xf32>
    %73 = vector.multi_reduction <add>, %72, %cst_49 [2] : vector<2x16x16xf32> to vector<2x16xf32>
    %74 = vector.shape_cast %73 : vector<2x16xf32> to vector<2x16x1xf32>
    %75 = tpu.reciprocal %74 {approx = true} : vector<2x16x1xf32> -> vector<2x16x1xf32>
    %76 = vector.broadcast %75 : vector<2x16x1xf32> to vector<2x16x16xf32>
    %77 = arith.mulf %72, %76 : vector<2x16x16xf32>
    %78 = arith.truncf %77 : vector<2x16x16xf32> to vector<2x16x16xbf16>
    "tpu.trace_start"() <{level = 10 : i32, message = "bts,bsd->btd"}> : () -> ()
    %cst_50 = arith.constant dense<0.000000e+00> : vector<2x16x8xf32>
    %79 = tpu.matmul %78, %65, %cst_50 {dimension_numbers = #tpu.dot_dimension_numbers<[2], [1], [1], [2], [0, 0, 0, 1, 1, 2], [0], [0]>} : vector<2x16x16xbf16>, vector<2x16x8xbf16>, vector<2x16x8xf32> -> vector<2x16x8xf32>
    "tpu.trace_stop"() : () -> ()
    %80 = vector.extract_strided_slice %31 {offsets = [0, 16], sizes = [32, 8], strides = [1, 1]} : vector<32x32xf32> to vector<32x8xf32>
    %81 = vector.shape_cast %80 : vector<32x8xf32> to vector<2x16x8xf32>
    %82 = arith.truncf %81 : vector<2x16x8xf32> to vector<2x16x8xbf16>
    %83 = vector.extract_strided_slice %32 {offsets = [0, 16], sizes = [32, 8], strides = [1, 1]} : vector<32x32xf32> to vector<32x8xf32>
    %84 = vector.shape_cast %83 : vector<32x8xf32> to vector<2x16x8xf32>
    %85 = arith.truncf %84 : vector<2x16x8xf32> to vector<2x16x8xbf16>
    %86 = vector.extract_strided_slice %33 {offsets = [0, 16], sizes = [32, 8], strides = [1, 1]} : vector<32x32xf32> to vector<32x8xf32>
    %87 = vector.shape_cast %86 : vector<32x8xf32> to vector<2x16x8xf32>
    %88 = arith.truncf %87 : vector<2x16x8xf32> to vector<2x16x8xbf16>
    "tpu.trace_start"() <{level = 10 : i32, message = "btd,bsd->bts"}> : () -> ()
    %cst_51 = arith.constant dense<0.000000e+00> : vector<2x16x16xf32>
    %89 = tpu.matmul %82, %85, %cst_51 {dimension_numbers = #tpu.dot_dimension_numbers<[2], [2], [1], [1], [0, 0, 0, 1, 1, 1], [0], [0]>} : vector<2x16x8xbf16>, vector<2x16x8xbf16>, vector<2x16x16xf32> -> vector<2x16x16xf32>
    "tpu.trace_stop"() : () -> ()
    %90 = arith.addf %89, %19 : vector<2x16x16xf32>
    %cst_52 = arith.constant dense<0xFF800000> : vector<2x16xf32>
    %91 = vector.multi_reduction <maximumf>, %90, %cst_52 [2] : vector<2x16x16xf32> to vector<2x16xf32>
    %92 = vector.shape_cast %91 : vector<2x16xf32> to vector<2x16x1xf32>
    %93 = vector.broadcast %92 : vector<2x16x1xf32> to vector<2x16x16xf32>
    %94 = arith.subf %90, %93 : vector<2x16x16xf32>
    %95 = math.exp %94 : vector<2x16x16xf32>
    %cst_53 = arith.constant dense<0.000000e+00> : vector<2x16xf32>
    %96 = vector.multi_reduction <add>, %95, %cst_53 [2] : vector<2x16x16xf32> to vector<2x16xf32>
    %97 = vector.shape_cast %96 : vector<2x16xf32> to vector<2x16x1xf32>
    %98 = tpu.reciprocal %97 {approx = true} : vector<2x16x1xf32> -> vector<2x16x1xf32>
    %99 = vector.broadcast %98 : vector<2x16x1xf32> to vector<2x16x16xf32>
    %100 = arith.mulf %95, %99 : vector<2x16x16xf32>
    %101 = arith.truncf %100 : vector<2x16x16xf32> to vector<2x16x16xbf16>
    "tpu.trace_start"() <{level = 10 : i32, message = "bts,bsd->btd"}> : () -> ()
    %cst_54 = arith.constant dense<0.000000e+00> : vector<2x16x8xf32>
    %102 = tpu.matmul %101, %88, %cst_54 {dimension_numbers = #tpu.dot_dimension_numbers<[2], [1], [1], [2], [0, 0, 0, 1, 1, 2], [0], [0]>} : vector<2x16x16xbf16>, vector<2x16x8xbf16>, vector<2x16x8xf32> -> vector<2x16x8xf32>
    "tpu.trace_stop"() : () -> ()
    %103 = vector.extract_strided_slice %31 {offsets = [0, 24], sizes = [32, 8], strides = [1, 1]} : vector<32x32xf32> to vector<32x8xf32>
    %104 = vector.shape_cast %103 : vector<32x8xf32> to vector<2x16x8xf32>
    %105 = arith.truncf %104 : vector<2x16x8xf32> to vector<2x16x8xbf16>
    %106 = vector.extract_strided_slice %32 {offsets = [0, 24], sizes = [32, 8], strides = [1, 1]} : vector<32x32xf32> to vector<32x8xf32>
    %107 = vector.shape_cast %106 : vector<32x8xf32> to vector<2x16x8xf32>
    %108 = arith.truncf %107 : vector<2x16x8xf32> to vector<2x16x8xbf16>
    %109 = vector.extract_strided_slice %33 {offsets = [0, 24], sizes = [32, 8], strides = [1, 1]} : vector<32x32xf32> to vector<32x8xf32>
    %110 = vector.shape_cast %109 : vector<32x8xf32> to vector<2x16x8xf32>
    %111 = arith.truncf %110 : vector<2x16x8xf32> to vector<2x16x8xbf16>
    "tpu.trace_start"() <{level = 10 : i32, message = "btd,bsd->bts"}> : () -> ()
    %cst_55 = arith.constant dense<0.000000e+00> : vector<2x16x16xf32>
    %112 = tpu.matmul %105, %108, %cst_55 {dimension_numbers = #tpu.dot_dimension_numbers<[2], [2], [1], [1], [0, 0, 0, 1, 1, 1], [0], [0]>} : vector<2x16x8xbf16>, vector<2x16x8xbf16>, vector<2x16x16xf32> -> vector<2x16x16xf32>
    "tpu.trace_stop"() : () -> ()
    %113 = arith.addf %112, %19 : vector<2x16x16xf32>
    %cst_56 = arith.constant dense<0xFF800000> : vector<2x16xf32>
    %114 = vector.multi_reduction <maximumf>, %113, %cst_56 [2] : vector<2x16x16xf32> to vector<2x16xf32>
    %115 = vector.shape_cast %114 : vector<2x16xf32> to vector<2x16x1xf32>
    %116 = vector.broadcast %115 : vector<2x16x1xf32> to vector<2x16x16xf32>
    %117 = arith.subf %113, %116 : vector<2x16x16xf32>
    %118 = math.exp %117 : vector<2x16x16xf32>
    %cst_57 = arith.constant dense<0.000000e+00> : vector<2x16xf32>
    %119 = vector.multi_reduction <add>, %118, %cst_57 [2] : vector<2x16x16xf32> to vector<2x16xf32>
    %120 = vector.shape_cast %119 : vector<2x16xf32> to vector<2x16x1xf32>
    %121 = tpu.reciprocal %120 {approx = true} : vector<2x16x1xf32> -> vector<2x16x1xf32>
    %122 = vector.broadcast %121 : vector<2x16x1xf32> to vector<2x16x16xf32>
    %123 = arith.mulf %118, %122 : vector<2x16x16xf32>
    %124 = arith.truncf %123 : vector<2x16x16xf32> to vector<2x16x16xbf16>
    "tpu.trace_start"() <{level = 10 : i32, message = "bts,bsd->btd"}> : () -> ()
    %cst_58 = arith.constant dense<0.000000e+00> : vector<2x16x8xf32>
    %125 = tpu.matmul %124, %111, %cst_58 {dimension_numbers = #tpu.dot_dimension_numbers<[2], [1], [1], [2], [0, 0, 0, 1, 1, 2], [0], [0]>} : vector<2x16x16xbf16>, vector<2x16x8xbf16>, vector<2x16x8xf32> -> vector<2x16x8xf32>
    "tpu.trace_stop"() : () -> ()
    %126 = tpu.concatenate %56, %79, %102, %125 in 2 : vector<2x16x8xf32>, vector<2x16x8xf32>, vector<2x16x8xf32>, vector<2x16x8xf32> -> vector<2x16x32xf32>
    %127 = vector.shape_cast %126 : vector<2x16x32xf32> to vector<32x32xf32>
    %128 = arith.truncf %127 : vector<32x32xf32> to vector<32x32xbf16>
    %129 = vector.extract_strided_slice %2 {offsets = [0, 0, 0], sizes = [1, 32, 32], strides = [1, 1, 1]} : vector<2x32x32xbf16> to vector<1x32x32xbf16>
    %130 = vector.shape_cast %129 : vector<1x32x32xbf16> to vector<32x32xbf16>
    %cst_59 = arith.constant dense<0.000000e+00> : vector<32x32xf32>
    %131 = tpu.matmul %128, %130, %cst_59 {dimension_numbers = #tpu.dot_dimension_numbers<[1], [0], [0], [1], [0, 0, 1, 1], [], []>} : vector<32x32xbf16>, vector<32x32xbf16>, vector<32x32xf32> -> vector<32x32xf32>
    %132 = vector.extract_strided_slice %3 {offsets = [0, 0, 0], sizes = [1, 1, 32], strides = [1, 1, 1]} : vector<2x1x32xf32> to vector<1x1x32xf32>
    %133 = vector.shape_cast %132 : vector<1x1x32xf32> to vector<1x32xf32>
    %134 = vector.broadcast %133 : vector<1x32xf32> to vector<32x32xf32>
    %135 = arith.addf %131, %134 : vector<32x32xf32>
    %136 = arith.addf %20, %135 : vector<32x32xf32>
    %137 = vector.extract_strided_slice %4 {offsets = [0, 0, 0], sizes = [1, 1, 32], strides = [1, 1, 1]} : vector<2x1x32xf32> to vector<1x1x32xf32>
    %138 = vector.shape_cast %137 : vector<1x1x32xf32> to vector<1x32xf32>
    %139 = vector.extract_strided_slice %5 {offsets = [0, 0, 0], sizes = [1, 1, 32], strides = [1, 1, 1]} : vector<2x1x32xf32> to vector<1x1x32xf32>
    %140 = vector.shape_cast %139 : vector<1x1x32xf32> to vector<1x32xf32>
    %cst_60 = arith.constant dense<0.000000e+00> : vector<32xf32>
    %141 = vector.multi_reduction <add>, %136, %cst_60 [1] : vector<32x32xf32> to vector<32xf32>
    %142 = vector.shape_cast %141 : vector<32xf32> to vector<32x1xf32>
    %cst_61 = arith.constant 3.200000e+01 : f32
    %143 = vector.broadcast %cst_61 : f32 to vector<32x1xf32>
    %144 = arith.divf %142, %143 : vector<32x1xf32>
    %145 = vector.broadcast %144 : vector<32x1xf32> to vector<32x32xf32>
    %146 = arith.subf %136, %145 : vector<32x32xf32>
    %147 = arith.mulf %146, %146 : vector<32x32xf32>
    %cst_62 = arith.constant dense<0.000000e+00> : vector<32xf32>
    %148 = vector.multi_reduction <add>, %147, %cst_62 [1] : vector<32x32xf32> to vector<32xf32>
    %149 = vector.shape_cast %148 : vector<32xf32> to vector<32x1xf32>
    %cst_63 = arith.constant 3.200000e+01 : f32
    %150 = vector.broadcast %cst_63 : f32 to vector<32x1xf32>
    %151 = arith.divf %149, %150 : vector<32x1xf32>
    %152 = vector.broadcast %144 : vector<32x1xf32> to vector<32x32xf32>
    %153 = arith.subf %136, %152 : vector<32x32xf32>
    %cst_64 = arith.constant 9.99999996E-13 : f32
    %154 = vector.broadcast %cst_64 : f32 to vector<32x1xf32>
    %155 = arith.addf %151, %154 : vector<32x1xf32>
    %156 = math.rsqrt %155 : vector<32x1xf32>
    %157 = vector.broadcast %156 : vector<32x1xf32> to vector<32x32xf32>
    %158 = arith.mulf %153, %157 : vector<32x32xf32>
    %159 = vector.broadcast %138 : vector<1x32xf32> to vector<32x32xf32>
    %160 = arith.mulf %158, %159 : vector<32x32xf32>
    %161 = vector.broadcast %140 : vector<1x32xf32> to vector<32x32xf32>
    %162 = arith.addf %160, %161 : vector<32x32xf32>
    %163 = arith.truncf %162 : vector<32x32xf32> to vector<32x32xbf16>
    %164 = vector.extract_strided_slice %6 {offsets = [0, 0, 0], sizes = [1, 32, 128], strides = [1, 1, 1]} : vector<2x32x128xbf16> to vector<1x32x128xbf16>
    %165 = vector.shape_cast %164 : vector<1x32x128xbf16> to vector<32x128xbf16>
    %cst_65 = arith.constant dense<0.000000e+00> : vector<32x128xf32>
    %166 = tpu.matmul %163, %165, %cst_65 {dimension_numbers = #tpu.dot_dimension_numbers<[1], [0], [0], [1], [0, 0, 1, 1], [], []>} : vector<32x32xbf16>, vector<32x128xbf16>, vector<32x128xf32> -> vector<32x128xf32>
    %167 = vector.extract_strided_slice %7 {offsets = [0, 0, 0], sizes = [1, 1, 128], strides = [1, 1, 1]} : vector<2x1x128xf32> to vector<1x1x128xf32>
    %168 = vector.shape_cast %167 : vector<1x1x128xf32> to vector<1x128xf32>
    %169 = vector.broadcast %168 : vector<1x128xf32> to vector<32x128xf32>
    %170 = arith.addf %166, %169 : vector<32x128xf32>
    %171 = arith.mulf %170, %170 : vector<32x128xf32>
    %172 = arith.mulf %170, %171 : vector<32x128xf32>
    %cst_66 = arith.constant 4.471500e-02 : f32
    %173 = vector.broadcast %cst_66 : f32 to vector<32x128xf32>
    %174 = arith.mulf %173, %172 : vector<32x128xf32>
    %175 = arith.addf %170, %174 : vector<32x128xf32>
    %cst_67 = arith.constant 0.797884583 : f32
    %176 = vector.broadcast %cst_67 : f32 to vector<32x128xf32>
    %177 = arith.mulf %176, %175 : vector<32x128xf32>
    %178 = math.tanh %177 : vector<32x128xf32>
    %cst_68 = arith.constant 1.000000e+00 : f32
    %179 = vector.broadcast %cst_68 : f32 to vector<32x128xf32>
    %180 = arith.addf %179, %178 : vector<32x128xf32>
    %cst_69 = arith.constant 5.000000e-01 : f32
    %181 = vector.broadcast %cst_69 : f32 to vector<32x128xf32>
    %182 = arith.mulf %181, %180 : vector<32x128xf32>
    %183 = arith.mulf %170, %182 : vector<32x128xf32>
    %184 = arith.truncf %183 : vector<32x128xf32> to vector<32x128xbf16>
    %185 = vector.extract_strided_slice %8 {offsets = [0, 0, 0], sizes = [1, 128, 32], strides = [1, 1, 1]} : vector<2x128x32xbf16> to vector<1x128x32xbf16>
    %186 = vector.shape_cast %185 : vector<1x128x32xbf16> to vector<128x32xbf16>
    %cst_70 = arith.constant dense<0.000000e+00> : vector<32x32xf32>
    %187 = tpu.matmul %184, %186, %cst_70 {dimension_numbers = #tpu.dot_dimension_numbers<[1], [0], [0], [1], [0, 0, 1, 1], [], []>} : vector<32x128xbf16>, vector<128x32xbf16>, vector<32x32xf32> -> vector<32x32xf32>
    %188 = vector.extract_strided_slice %9 {offsets = [0, 0, 0], sizes = [1, 1, 32], strides = [1, 1, 1]} : vector<2x1x32xf32> to vector<1x1x32xf32>
    %189 = vector.shape_cast %188 : vector<1x1x32xf32> to vector<1x32xf32>
    %190 = vector.broadcast %189 : vector<1x32xf32> to vector<32x32xf32>
    %191 = arith.addf %187, %190 : vector<32x32xf32>
    %192 = arith.addf %162, %191 : vector<32x32xf32>
    %193 = vector.extract_strided_slice %10 {offsets = [0, 0, 0], sizes = [1, 1, 32], strides = [1, 1, 1]} : vector<2x1x32xf32> to vector<1x1x32xf32>
    %194 = vector.shape_cast %193 : vector<1x1x32xf32> to vector<1x32xf32>
    %195 = vector.extract_strided_slice %11 {offsets = [0, 0, 0], sizes = [1, 1, 32], strides = [1, 1, 1]} : vector<2x1x32xf32> to vector<1x1x32xf32>
    %196 = vector.shape_cast %195 : vector<1x1x32xf32> to vector<1x32xf32>
    %cst_71 = arith.constant dense<0.000000e+00> : vector<32xf32>
    %197 = vector.multi_reduction <add>, %192, %cst_71 [1] : vector<32x32xf32> to vector<32xf32>
    %198 = vector.shape_cast %197 : vector<32xf32> to vector<32x1xf32>
    %cst_72 = arith.constant 3.200000e+01 : f32
    %199 = vector.broadcast %cst_72 : f32 to vector<32x1xf32>
    %200 = arith.divf %198, %199 : vector<32x1xf32>
    %201 = vector.broadcast %200 : vector<32x1xf32> to vector<32x32xf32>
    %202 = arith.subf %192, %201 : vector<32x32xf32>
    %203 = arith.mulf %202, %202 : vector<32x32xf32>
    %cst_73 = arith.constant dense<0.000000e+00> : vector<32xf32>
    %204 = vector.multi_reduction <add>, %203, %cst_73 [1] : vector<32x32xf32> to vector<32xf32>
    %205 = vector.shape_cast %204 : vector<32xf32> to vector<32x1xf32>
    %cst_74 = arith.constant 3.200000e+01 : f32
    %206 = vector.broadcast %cst_74 : f32 to vector<32x1xf32>
    %207 = arith.divf %205, %206 : vector<32x1xf32>
    %208 = vector.broadcast %200 : vector<32x1xf32> to vector<32x32xf32>
    %209 = arith.subf %192, %208 : vector<32x32xf32>
    %cst_75 = arith.constant 9.99999996E-13 : f32
    %210 = vector.broadcast %cst_75 : f32 to vector<32x1xf32>
    %211 = arith.addf %207, %210 : vector<32x1xf32>
    %212 = math.rsqrt %211 : vector<32x1xf32>
    %213 = vector.broadcast %212 : vector<32x1xf32> to vector<32x32xf32>
    %214 = arith.mulf %209, %213 : vector<32x32xf32>
    %215 = vector.broadcast %194 : vector<1x32xf32> to vector<32x32xf32>
    %216 = arith.mulf %214, %215 : vector<32x32xf32>
    %217 = vector.broadcast %196 : vector<1x32xf32> to vector<32x32xf32>
    %218 = arith.addf %216, %217 : vector<32x32xf32>
    %219 = arith.truncf %218 : vector<32x32xf32> to vector<32x32xbf16>
    %220 = vector.extract_strided_slice %0 {offsets = [1, 0, 0], sizes = [1, 32, 96], strides = [1, 1, 1]} : vector<2x32x96xbf16> to vector<1x32x96xbf16>
    %221 = vector.shape_cast %220 : vector<1x32x96xbf16> to vector<32x96xbf16>
    %cst_76 = arith.constant dense<0.000000e+00> : vector<32x96xf32>
    %222 = tpu.matmul %219, %221, %cst_76 {dimension_numbers = #tpu.dot_dimension_numbers<[1], [0], [0], [1], [0, 0, 1, 1], [], []>} : vector<32x32xbf16>, vector<32x96xbf16>, vector<32x96xf32> -> vector<32x96xf32>
    %223 = vector.extract_strided_slice %1 {offsets = [1, 0, 0], sizes = [1, 1, 96], strides = [1, 1, 1]} : vector<2x1x96xf32> to vector<1x1x96xf32>
    %224 = vector.shape_cast %223 : vector<1x1x96xf32> to vector<1x96xf32>
    %225 = vector.broadcast %224 : vector<1x96xf32> to vector<32x96xf32>
    %226 = arith.addf %222, %225 : vector<32x96xf32>
    %227 = vector.extract_strided_slice %226 {offsets = [0, 0], sizes = [32, 32], strides = [1, 1]} : vector<32x96xf32> to vector<32x32xf32>
    %cst_77 = arith.constant 0.353553385 : f32
    %228 = vector.broadcast %cst_77 : f32 to vector<32x32xf32>
    %229 = arith.mulf %227, %228 : vector<32x32xf32>
    %230 = vector.extract_strided_slice %226 {offsets = [0, 32], sizes = [32, 32], strides = [1, 1]} : vector<32x96xf32> to vector<32x32xf32>
    %231 = vector.extract_strided_slice %226 {offsets = [0, 64], sizes = [32, 32], strides = [1, 1]} : vector<32x96xf32> to vector<32x32xf32>
    %232 = vector.extract_strided_slice %229 {offsets = [0, 0], sizes = [32, 8], strides = [1, 1]} : vector<32x32xf32> to vector<32x8xf32>
    %233 = vector.shape_cast %232 : vector<32x8xf32> to vector<2x16x8xf32>
    %234 = arith.truncf %233 : vector<2x16x8xf32> to vector<2x16x8xbf16>
    %235 = vector.extract_strided_slice %230 {offsets = [0, 0], sizes = [32, 8], strides = [1, 1]} : vector<32x32xf32> to vector<32x8xf32>
    %236 = vector.shape_cast %235 : vector<32x8xf32> to vector<2x16x8xf32>
    %237 = arith.truncf %236 : vector<2x16x8xf32> to vector<2x16x8xbf16>
    %238 = vector.extract_strided_slice %231 {offsets = [0, 0], sizes = [32, 8], strides = [1, 1]} : vector<32x32xf32> to vector<32x8xf32>
    %239 = vector.shape_cast %238 : vector<32x8xf32> to vector<2x16x8xf32>
    %240 = arith.truncf %239 : vector<2x16x8xf32> to vector<2x16x8xbf16>
    "tpu.trace_start"() <{level = 10 : i32, message = "btd,bsd->bts"}> : () -> ()
    %cst_78 = arith.constant dense<0.000000e+00> : vector<2x16x16xf32>
    %241 = tpu.matmul %234, %237, %cst_78 {dimension_numbers = #tpu.dot_dimension_numbers<[2], [2], [1], [1], [0, 0, 0, 1, 1, 1], [0], [0]>} : vector<2x16x8xbf16>, vector<2x16x8xbf16>, vector<2x16x16xf32> -> vector<2x16x16xf32>
    "tpu.trace_stop"() : () -> ()
    %242 = arith.addf %241, %19 : vector<2x16x16xf32>
    %cst_79 = arith.constant dense<0xFF800000> : vector<2x16xf32>
    %243 = vector.multi_reduction <maximumf>, %242, %cst_79 [2] : vector<2x16x16xf32> to vector<2x16xf32>
    %244 = vector.shape_cast %243 : vector<2x16xf32> to vector<2x16x1xf32>
    %245 = vector.broadcast %244 : vector<2x16x1xf32> to vector<2x16x16xf32>
    %246 = arith.subf %242, %245 : vector<2x16x16xf32>
    %247 = math.exp %246 : vector<2x16x16xf32>
    %cst_80 = arith.constant dense<0.000000e+00> : vector<2x16xf32>
    %248 = vector.multi_reduction <add>, %247, %cst_80 [2] : vector<2x16x16xf32> to vector<2x16xf32>
    %249 = vector.shape_cast %248 : vector<2x16xf32> to vector<2x16x1xf32>
    %250 = tpu.reciprocal %249 {approx = true} : vector<2x16x1xf32> -> vector<2x16x1xf32>
    %251 = vector.broadcast %250 : vector<2x16x1xf32> to vector<2x16x16xf32>
    %252 = arith.mulf %247, %251 : vector<2x16x16xf32>
    %253 = arith.truncf %252 : vector<2x16x16xf32> to vector<2x16x16xbf16>
    "tpu.trace_start"() <{level = 10 : i32, message = "bts,bsd->btd"}> : () -> ()
    %cst_81 = arith.constant dense<0.000000e+00> : vector<2x16x8xf32>
    %254 = tpu.matmul %253, %240, %cst_81 {dimension_numbers = #tpu.dot_dimension_numbers<[2], [1], [1], [2], [0, 0, 0, 1, 1, 2], [0], [0]>} : vector<2x16x16xbf16>, vector<2x16x8xbf16>, vector<2x16x8xf32> -> vector<2x16x8xf32>
    "tpu.trace_stop"() : () -> ()
    %255 = vector.extract_strided_slice %229 {offsets = [0, 8], sizes = [32, 8], strides = [1, 1]} : vector<32x32xf32> to vector<32x8xf32>
    %256 = vector.shape_cast %255 : vector<32x8xf32> to vector<2x16x8xf32>
    %257 = arith.truncf %256 : vector<2x16x8xf32> to vector<2x16x8xbf16>
    %258 = vector.extract_strided_slice %230 {offsets = [0, 8], sizes = [32, 8], strides = [1, 1]} : vector<32x32xf32> to vector<32x8xf32>
    %259 = vector.shape_cast %258 : vector<32x8xf32> to vector<2x16x8xf32>
    %260 = arith.truncf %259 : vector<2x16x8xf32> to vector<2x16x8xbf16>
    %261 = vector.extract_strided_slice %231 {offsets = [0, 8], sizes = [32, 8], strides = [1, 1]} : vector<32x32xf32> to vector<32x8xf32>
    %262 = vector.shape_cast %261 : vector<32x8xf32> to vector<2x16x8xf32>
    %263 = arith.truncf %262 : vector<2x16x8xf32> to vector<2x16x8xbf16>
    "tpu.trace_start"() <{level = 10 : i32, message = "btd,bsd->bts"}> : () -> ()
    %cst_82 = arith.constant dense<0.000000e+00> : vector<2x16x16xf32>
    %264 = tpu.matmul %257, %260, %cst_82 {dimension_numbers = #tpu.dot_dimension_numbers<[2], [2], [1], [1], [0, 0, 0, 1, 1, 1], [0], [0]>} : vector<2x16x8xbf16>, vector<2x16x8xbf16>, vector<2x16x16xf32> -> vector<2x16x16xf32>
    "tpu.trace_stop"() : () -> ()
    %265 = arith.addf %264, %19 : vector<2x16x16xf32>
    %cst_83 = arith.constant dense<0xFF800000> : vector<2x16xf32>
    %266 = vector.multi_reduction <maximumf>, %265, %cst_83 [2] : vector<2x16x16xf32> to vector<2x16xf32>
    %267 = vector.shape_cast %266 : vector<2x16xf32> to vector<2x16x1xf32>
    %268 = vector.broadcast %267 : vector<2x16x1xf32> to vector<2x16x16xf32>
    %269 = arith.subf %265, %268 : vector<2x16x16xf32>
    %270 = math.exp %269 : vector<2x16x16xf32>
    %cst_84 = arith.constant dense<0.000000e+00> : vector<2x16xf32>
    %271 = vector.multi_reduction <add>, %270, %cst_84 [2] : vector<2x16x16xf32> to vector<2x16xf32>
    %272 = vector.shape_cast %271 : vector<2x16xf32> to vector<2x16x1xf32>
    %273 = tpu.reciprocal %272 {approx = true} : vector<2x16x1xf32> -> vector<2x16x1xf32>
    %274 = vector.broadcast %273 : vector<2x16x1xf32> to vector<2x16x16xf32>
    %275 = arith.mulf %270, %274 : vector<2x16x16xf32>
    %276 = arith.truncf %275 : vector<2x16x16xf32> to vector<2x16x16xbf16>
    "tpu.trace_start"() <{level = 10 : i32, message = "bts,bsd->btd"}> : () -> ()
    %cst_85 = arith.constant dense<0.000000e+00> : vector<2x16x8xf32>
    %277 = tpu.matmul %276, %263, %cst_85 {dimension_numbers = #tpu.dot_dimension_numbers<[2], [1], [1], [2], [0, 0, 0, 1, 1, 2], [0], [0]>} : vector<2x16x16xbf16>, vector<2x16x8xbf16>, vector<2x16x8xf32> -> vector<2x16x8xf32>
    "tpu.trace_stop"() : () -> ()
    %278 = vector.extract_strided_slice %229 {offsets = [0, 16], sizes = [32, 8], strides = [1, 1]} : vector<32x32xf32> to vector<32x8xf32>
    %279 = vector.shape_cast %278 : vector<32x8xf32> to vector<2x16x8xf32>
    %280 = arith.truncf %279 : vector<2x16x8xf32> to vector<2x16x8xbf16>
    %281 = vector.extract_strided_slice %230 {offsets = [0, 16], sizes = [32, 8], strides = [1, 1]} : vector<32x32xf32> to vector<32x8xf32>
    %282 = vector.shape_cast %281 : vector<32x8xf32> to vector<2x16x8xf32>
    %283 = arith.truncf %282 : vector<2x16x8xf32> to vector<2x16x8xbf16>
    %284 = vector.extract_strided_slice %231 {offsets = [0, 16], sizes = [32, 8], strides = [1, 1]} : vector<32x32xf32> to vector<32x8xf32>
    %285 = vector.shape_cast %284 : vector<32x8xf32> to vector<2x16x8xf32>
    %286 = arith.truncf %285 : vector<2x16x8xf32> to vector<2x16x8xbf16>
    "tpu.trace_start"() <{level = 10 : i32, message = "btd,bsd->bts"}> : () -> ()
    %cst_86 = arith.constant dense<0.000000e+00> : vector<2x16x16xf32>
    %287 = tpu.matmul %280, %283, %cst_86 {dimension_numbers = #tpu.dot_dimension_numbers<[2], [2], [1], [1], [0, 0, 0, 1, 1, 1], [0], [0]>} : vector<2x16x8xbf16>, vector<2x16x8xbf16>, vector<2x16x16xf32> -> vector<2x16x16xf32>
    "tpu.trace_stop"() : () -> ()
    %288 = arith.addf %287, %19 : vector<2x16x16xf32>
    %cst_87 = arith.constant dense<0xFF800000> : vector<2x16xf32>
    %289 = vector.multi_reduction <maximumf>, %288, %cst_87 [2] : vector<2x16x16xf32> to vector<2x16xf32>
    %290 = vector.shape_cast %289 : vector<2x16xf32> to vector<2x16x1xf32>
    %291 = vector.broadcast %290 : vector<2x16x1xf32> to vector<2x16x16xf32>
    %292 = arith.subf %288, %291 : vector<2x16x16xf32>
    %293 = math.exp %292 : vector<2x16x16xf32>
    %cst_88 = arith.constant dense<0.000000e+00> : vector<2x16xf32>
    %294 = vector.multi_reduction <add>, %293, %cst_88 [2] : vector<2x16x16xf32> to vector<2x16xf32>
    %295 = vector.shape_cast %294 : vector<2x16xf32> to vector<2x16x1xf32>
    %296 = tpu.reciprocal %295 {approx = true} : vector<2x16x1xf32> -> vector<2x16x1xf32>
    %297 = vector.broadcast %296 : vector<2x16x1xf32> to vector<2x16x16xf32>
    %298 = arith.mulf %293, %297 : vector<2x16x16xf32>
    %299 = arith.truncf %298 : vector<2x16x16xf32> to vector<2x16x16xbf16>
    "tpu.trace_start"() <{level = 10 : i32, message = "bts,bsd->btd"}> : () -> ()
    %cst_89 = arith.constant dense<0.000000e+00> : vector<2x16x8xf32>
    %300 = tpu.matmul %299, %286, %cst_89 {dimension_numbers = #tpu.dot_dimension_numbers<[2], [1], [1], [2], [0, 0, 0, 1, 1, 2], [0], [0]>} : vector<2x16x16xbf16>, vector<2x16x8xbf16>, vector<2x16x8xf32> -> vector<2x16x8xf32>
    "tpu.trace_stop"() : () -> ()
    %301 = vector.extract_strided_slice %229 {offsets = [0, 24], sizes = [32, 8], strides = [1, 1]} : vector<32x32xf32> to vector<32x8xf32>
    %302 = vector.shape_cast %301 : vector<32x8xf32> to vector<2x16x8xf32>
    %303 = arith.truncf %302 : vector<2x16x8xf32> to vector<2x16x8xbf16>
    %304 = vector.extract_strided_slice %230 {offsets = [0, 24], sizes = [32, 8], strides = [1, 1]} : vector<32x32xf32> to vector<32x8xf32>
    %305 = vector.shape_cast %304 : vector<32x8xf32> to vector<2x16x8xf32>
    %306 = arith.truncf %305 : vector<2x16x8xf32> to vector<2x16x8xbf16>
    %307 = vector.extract_strided_slice %231 {offsets = [0, 24], sizes = [32, 8], strides = [1, 1]} : vector<32x32xf32> to vector<32x8xf32>
    %308 = vector.shape_cast %307 : vector<32x8xf32> to vector<2x16x8xf32>
    %309 = arith.truncf %308 : vector<2x16x8xf32> to vector<2x16x8xbf16>
    "tpu.trace_start"() <{level = 10 : i32, message = "btd,bsd->bts"}> : () -> ()
    %cst_90 = arith.constant dense<0.000000e+00> : vector<2x16x16xf32>
    %310 = tpu.matmul %303, %306, %cst_90 {dimension_numbers = #tpu.dot_dimension_numbers<[2], [2], [1], [1], [0, 0, 0, 1, 1, 1], [0], [0]>} : vector<2x16x8xbf16>, vector<2x16x8xbf16>, vector<2x16x16xf32> -> vector<2x16x16xf32>
    "tpu.trace_stop"() : () -> ()
    %311 = arith.addf %310, %19 : vector<2x16x16xf32>
    %cst_91 = arith.constant dense<0xFF800000> : vector<2x16xf32>
    %312 = vector.multi_reduction <maximumf>, %311, %cst_91 [2] : vector<2x16x16xf32> to vector<2x16xf32>
    %313 = vector.shape_cast %312 : vector<2x16xf32> to vector<2x16x1xf32>
    %314 = vector.broadcast %313 : vector<2x16x1xf32> to vector<2x16x16xf32>
    %315 = arith.subf %311, %314 : vector<2x16x16xf32>
    %316 = math.exp %315 : vector<2x16x16xf32>
    %cst_92 = arith.constant dense<0.000000e+00> : vector<2x16xf32>
    %317 = vector.multi_reduction <add>, %316, %cst_92 [2] : vector<2x16x16xf32> to vector<2x16xf32>
    %318 = vector.shape_cast %317 : vector<2x16xf32> to vector<2x16x1xf32>
    %319 = tpu.reciprocal %318 {approx = true} : vector<2x16x1xf32> -> vector<2x16x1xf32>
    %320 = vector.broadcast %319 : vector<2x16x1xf32> to vector<2x16x16xf32>
    %321 = arith.mulf %316, %320 : vector<2x16x16xf32>
    %322 = arith.truncf %321 : vector<2x16x16xf32> to vector<2x16x16xbf16>
    "tpu.trace_start"() <{level = 10 : i32, message = "bts,bsd->btd"}> : () -> ()
    %cst_93 = arith.constant dense<0.000000e+00> : vector<2x16x8xf32>
    %323 = tpu.matmul %322, %309, %cst_93 {dimension_numbers = #tpu.dot_dimension_numbers<[2], [1], [1], [2], [0, 0, 0, 1, 1, 2], [0], [0]>} : vector<2x16x16xbf16>, vector<2x16x8xbf16>, vector<2x16x8xf32> -> vector<2x16x8xf32>
    "tpu.trace_stop"() : () -> ()
    %324 = tpu.concatenate %254, %277, %300, %323 in 2 : vector<2x16x8xf32>, vector<2x16x8xf32>, vector<2x16x8xf32>, vector<2x16x8xf32> -> vector<2x16x32xf32>
    %325 = vector.shape_cast %324 : vector<2x16x32xf32> to vector<32x32xf32>
    %326 = arith.truncf %325 : vector<32x32xf32> to vector<32x32xbf16>
    %327 = vector.extract_strided_slice %2 {offsets = [1, 0, 0], sizes = [1, 32, 32], strides = [1, 1, 1]} : vector<2x32x32xbf16> to vector<1x32x32xbf16>
    %328 = vector.shape_cast %327 : vector<1x32x32xbf16> to vector<32x32xbf16>
    %cst_94 = arith.constant dense<0.000000e+00> : vector<32x32xf32>
    %329 = tpu.matmul %326, %328, %cst_94 {dimension_numbers = #tpu.dot_dimension_numbers<[1], [0], [0], [1], [0, 0, 1, 1], [], []>} : vector<32x32xbf16>, vector<32x32xbf16>, vector<32x32xf32> -> vector<32x32xf32>
    %330 = vector.extract_strided_slice %3 {offsets = [1, 0, 0], sizes = [1, 1, 32], strides = [1, 1, 1]} : vector<2x1x32xf32> to vector<1x1x32xf32>
    %331 = vector.shape_cast %330 : vector<1x1x32xf32> to vector<1x32xf32>
    %332 = vector.broadcast %331 : vector<1x32xf32> to vector<32x32xf32>
    %333 = arith.addf %329, %332 : vector<32x32xf32>
    %334 = arith.addf %218, %333 : vector<32x32xf32>
    %335 = vector.extract_strided_slice %4 {offsets = [1, 0, 0], sizes = [1, 1, 32], strides = [1, 1, 1]} : vector<2x1x32xf32> to vector<1x1x32xf32>
    %336 = vector.shape_cast %335 : vector<1x1x32xf32> to vector<1x32xf32>
    %337 = vector.extract_strided_slice %5 {offsets = [1, 0, 0], sizes = [1, 1, 32], strides = [1, 1, 1]} : vector<2x1x32xf32> to vector<1x1x32xf32>
    %338 = vector.shape_cast %337 : vector<1x1x32xf32> to vector<1x32xf32>
    %cst_95 = arith.constant dense<0.000000e+00> : vector<32xf32>
    %339 = vector.multi_reduction <add>, %334, %cst_95 [1] : vector<32x32xf32> to vector<32xf32>
    %340 = vector.shape_cast %339 : vector<32xf32> to vector<32x1xf32>
    %cst_96 = arith.constant 3.200000e+01 : f32
    %341 = vector.broadcast %cst_96 : f32 to vector<32x1xf32>
    %342 = arith.divf %340, %341 : vector<32x1xf32>
    %343 = vector.broadcast %342 : vector<32x1xf32> to vector<32x32xf32>
    %344 = arith.subf %334, %343 : vector<32x32xf32>
    %345 = arith.mulf %344, %344 : vector<32x32xf32>
    %cst_97 = arith.constant dense<0.000000e+00> : vector<32xf32>
    %346 = vector.multi_reduction <add>, %345, %cst_97 [1] : vector<32x32xf32> to vector<32xf32>
    %347 = vector.shape_cast %346 : vector<32xf32> to vector<32x1xf32>
    %cst_98 = arith.constant 3.200000e+01 : f32
    %348 = vector.broadcast %cst_98 : f32 to vector<32x1xf32>
    %349 = arith.divf %347, %348 : vector<32x1xf32>
    %350 = vector.broadcast %342 : vector<32x1xf32> to vector<32x32xf32>
    %351 = arith.subf %334, %350 : vector<32x32xf32>
    %cst_99 = arith.constant 9.99999996E-13 : f32
    %352 = vector.broadcast %cst_99 : f32 to vector<32x1xf32>
    %353 = arith.addf %349, %352 : vector<32x1xf32>
    %354 = math.rsqrt %353 : vector<32x1xf32>
    %355 = vector.broadcast %354 : vector<32x1xf32> to vector<32x32xf32>
    %356 = arith.mulf %351, %355 : vector<32x32xf32>
    %357 = vector.broadcast %336 : vector<1x32xf32> to vector<32x32xf32>
    %358 = arith.mulf %356, %357 : vector<32x32xf32>
    %359 = vector.broadcast %338 : vector<1x32xf32> to vector<32x32xf32>
    %360 = arith.addf %358, %359 : vector<32x32xf32>
    %361 = arith.truncf %360 : vector<32x32xf32> to vector<32x32xbf16>
    %362 = vector.extract_strided_slice %6 {offsets = [1, 0, 0], sizes = [1, 32, 128], strides = [1, 1, 1]} : vector<2x32x128xbf16> to vector<1x32x128xbf16>
    %363 = vector.shape_cast %362 : vector<1x32x128xbf16> to vector<32x128xbf16>
    %cst_100 = arith.constant dense<0.000000e+00> : vector<32x128xf32>
    %364 = tpu.matmul %361, %363, %cst_100 {dimension_numbers = #tpu.dot_dimension_numbers<[1], [0], [0], [1], [0, 0, 1, 1], [], []>} : vector<32x32xbf16>, vector<32x128xbf16>, vector<32x128xf32> -> vector<32x128xf32>
    %365 = vector.extract_strided_slice %7 {offsets = [1, 0, 0], sizes = [1, 1, 128], strides = [1, 1, 1]} : vector<2x1x128xf32> to vector<1x1x128xf32>
    %366 = vector.shape_cast %365 : vector<1x1x128xf32> to vector<1x128xf32>
    %367 = vector.broadcast %366 : vector<1x128xf32> to vector<32x128xf32>
    %368 = arith.addf %364, %367 : vector<32x128xf32>
    %369 = arith.mulf %368, %368 : vector<32x128xf32>
    %370 = arith.mulf %368, %369 : vector<32x128xf32>
    %cst_101 = arith.constant 4.471500e-02 : f32
    %371 = vector.broadcast %cst_101 : f32 to vector<32x128xf32>
    %372 = arith.mulf %371, %370 : vector<32x128xf32>
    %373 = arith.addf %368, %372 : vector<32x128xf32>
    %cst_102 = arith.constant 0.797884583 : f32
    %374 = vector.broadcast %cst_102 : f32 to vector<32x128xf32>
    %375 = arith.mulf %374, %373 : vector<32x128xf32>
    %376 = math.tanh %375 : vector<32x128xf32>
    %cst_103 = arith.constant 1.000000e+00 : f32
    %377 = vector.broadcast %cst_103 : f32 to vector<32x128xf32>
    %378 = arith.addf %377, %376 : vector<32x128xf32>
    %cst_104 = arith.constant 5.000000e-01 : f32
    %379 = vector.broadcast %cst_104 : f32 to vector<32x128xf32>
    %380 = arith.mulf %379, %378 : vector<32x128xf32>
    %381 = arith.mulf %368, %380 : vector<32x128xf32>
    %382 = arith.truncf %381 : vector<32x128xf32> to vector<32x128xbf16>
    %383 = vector.extract_strided_slice %8 {offsets = [1, 0, 0], sizes = [1, 128, 32], strides = [1, 1, 1]} : vector<2x128x32xbf16> to vector<1x128x32xbf16>
    %384 = vector.shape_cast %383 : vector<1x128x32xbf16> to vector<128x32xbf16>
    %cst_105 = arith.constant dense<0.000000e+00> : vector<32x32xf32>
    %385 = tpu.matmul %382, %384, %cst_105 {dimension_numbers = #tpu.dot_dimension_numbers<[1], [0], [0], [1], [0, 0, 1, 1], [], []>} : vector<32x128xbf16>, vector<128x32xbf16>, vector<32x32xf32> -> vector<32x32xf32>
    %386 = vector.extract_strided_slice %9 {offsets = [1, 0, 0], sizes = [1, 1, 32], strides = [1, 1, 1]} : vector<2x1x32xf32> to vector<1x1x32xf32>
    %387 = vector.shape_cast %386 : vector<1x1x32xf32> to vector<1x32xf32>
    %388 = vector.broadcast %387 : vector<1x32xf32> to vector<32x32xf32>
    %389 = arith.addf %385, %388 : vector<32x32xf32>
    %390 = arith.addf %360, %389 : vector<32x32xf32>
    %391 = vector.extract_strided_slice %10 {offsets = [1, 0, 0], sizes = [1, 1, 32], strides = [1, 1, 1]} : vector<2x1x32xf32> to vector<1x1x32xf32>
    %392 = vector.shape_cast %391 : vector<1x1x32xf32> to vector<1x32xf32>
    %393 = vector.extract_strided_slice %11 {offsets = [1, 0, 0], sizes = [1, 1, 32], strides = [1, 1, 1]} : vector<2x1x32xf32> to vector<1x1x32xf32>
    %394 = vector.shape_cast %393 : vector<1x1x32xf32> to vector<1x32xf32>
    %cst_106 = arith.constant dense<0.000000e+00> : vector<32xf32>
    %395 = vector.multi_reduction <add>, %390, %cst_106 [1] : vector<32x32xf32> to vector<32xf32>
    %396 = vector.shape_cast %395 : vector<32xf32> to vector<32x1xf32>
    %cst_107 = arith.constant 3.200000e+01 : f32
    %397 = vector.broadcast %cst_107 : f32 to vector<32x1xf32>
    %398 = arith.divf %396, %397 : vector<32x1xf32>
    %399 = vector.broadcast %398 : vector<32x1xf32> to vector<32x32xf32>
    %400 = arith.subf %390, %399 : vector<32x32xf32>
    %401 = arith.mulf %400, %400 : vector<32x32xf32>
    %cst_108 = arith.constant dense<0.000000e+00> : vector<32xf32>
    %402 = vector.multi_reduction <add>, %401, %cst_108 [1] : vector<32x32xf32> to vector<32xf32>
    %403 = vector.shape_cast %402 : vector<32xf32> to vector<32x1xf32>
    %cst_109 = arith.constant 3.200000e+01 : f32
    %404 = vector.broadcast %cst_109 : f32 to vector<32x1xf32>
    %405 = arith.divf %403, %404 : vector<32x1xf32>
    %406 = vector.broadcast %398 : vector<32x1xf32> to vector<32x32xf32>
    %407 = arith.subf %390, %406 : vector<32x32xf32>
    %cst_110 = arith.constant 9.99999996E-13 : f32
    %408 = vector.broadcast %cst_110 : f32 to vector<32x1xf32>
    %409 = arith.addf %405, %408 : vector<32x1xf32>
    %410 = math.rsqrt %409 : vector<32x1xf32>
    %411 = vector.broadcast %410 : vector<32x1xf32> to vector<32x32xf32>
    %412 = arith.mulf %407, %411 : vector<32x32xf32>
    %413 = vector.broadcast %392 : vector<1x32xf32> to vector<32x32xf32>
    %414 = arith.mulf %412, %413 : vector<32x32xf32>
    %415 = vector.broadcast %394 : vector<1x32xf32> to vector<32x32xf32>
    %416 = arith.addf %414, %415 : vector<32x32xf32>
    %417 = vector.shape_cast %416 : vector<32x32xf32> to vector<2x16x32xf32>
    %418 = vector.extract_strided_slice %417 {offsets = [0, 8, 0], sizes = [2, 8, 32], strides = [1, 1, 1]} : vector<2x16x32xf32> to vector<2x8x32xf32>
    %c0_111 = arith.constant 0 : index
    %c0_112 = arith.constant 0 : index
    %c0_113 = arith.constant 0 : index
    %419 = vector.load %arg15[%c0_111, %c0_112, %c0_113] : memref<2x8x32xf32, #tpu.memory_space<vmem>>, vector<2x8x32xf32>
    tpu.vector_store %arg15[%c0_111, %c0_112, %c0_113], %418 {strides = array<i32>} : memref<2x8x32xf32, #tpu.memory_space<vmem>>, vector<2x8x32xf32>,
    return
  }
}

</mosaic_0001>

<llo_original>
// kernel: tpu_custom_call.1
$region0: #{tpu_custom_call.1}
  #allocation0 [shape = 'u32[]', space=smem, size = 0x4, offset = 0x4, fixed_abs, tag = 'smem constant byte address 0x4 - core index']
  #allocation1 [shape = 'u32[72,128]{1,0:T(1,128)}', space=vmem, size = 0x9000, scoped, tag = 'internal scratch']
  %s0 = inlined_call_operand.vmem [shape: f32[2,16,32], index: 0, kind: input, shape index: {}]
  %s1 = inlined_call_operand.vmem [shape: f32[16,16], index: 1, kind: input, shape index: {}]
  %s2 = inlined_call_operand.vmem [shape: f32[2,16], index: 2, kind: input, shape index: {}]
  %s3 = inlined_call_operand.vmem [shape: bf16[2,32,96], index: 3, kind: input, shape index: {}]
  %s4 = inlined_call_operand.vmem [shape: f32[2,1,96], index: 4, kind: input, shape index: {}]
  %s5 = inlined_call_operand.vmem [shape: bf16[2,32,32], index: 5, kind: input, shape index: {}]
  %s6 = inlined_call_operand.vmem [shape: f32[2,1,32], index: 6, kind: input, shape index: {}]
  %s7 = inlined_call_operand.vmem [shape: f32[2,1,32], index: 7, kind: input, shape index: {}]
  %s8 = inlined_call_operand.vmem [shape: f32[2,1,32], index: 8, kind: input, shape index: {}]
  %s9 = inlined_call_operand.vmem [shape: bf16[2,32,128], index: 9, kind: input, shape index: {}]
  %s10 = inlined_call_operand.vmem [shape: f32[2,1,128], index: 10, kind: input, shape index: {}]
  %s11 = inlined_call_operand.vmem [shape: bf16[2,128,32], index: 11, kind: input, shape index: {}]
  %s12 = inlined_call_operand.vmem [shape: f32[2,1,32], index: 12, kind: input, shape index: {}]
  %s13 = inlined_call_operand.vmem [shape: f32[2,1,32], index: 13, kind: input, shape index: {}]
  %s14 = inlined_call_operand.vmem [shape: f32[2,1,32], index: 14, kind: input, shape index: {}]
  %s15 = inlined_call_operand.hbm [shape: f32[2,8,32], index: 15, kind: output, shape index: {}]
  %s16 = sld [smem:[#allocation0]]
  $region70: #{tpu_custom_call.1} parent=0
    _
  %s18 = ssub.s32 1, %s16
  %s19 = scalar_select 0, %s18, %s16
  $region1: #{tpu_custom_call.1} parent=0
    #allocation2 [shape = 'u8[8192]{0}', space=vmem, size = 0x2000, scoped, tag = 'output window, operand 0, single buffered']
    #allocation3 [shape = 's32[1]{0}', space=sflag, size = 0x4, scoped, tag = 'scoped memory for tpu_custom_call.1']
    %20 = vsyncpa [#allocation3], 0
    // Predicated region
    $region2: #{tpu_custom_call.1} parent=1 // pred_check
      _
    $region3: #{tpu_custom_call.1} parent=1 // pred_check_branch
      %22 = sbr.rel (0) target = $region5
    $region4: #{tpu_custom_call.1} parent=1 // pred_region
      _
    $region5: #{tpu_custom_call.1} parent=1 // pred_fallthru
      _
    // Predicated region
    $region6: #{tpu_custom_call.1} parent=1 // pred_check
      _
    $region7: #{tpu_custom_call.1} parent=1 // pred_check_branch
      %24 = sbr.rel (0) target = $region9
    $region8: #{tpu_custom_call.1} parent=1 // pred_region
      _
    $region9: #{tpu_custom_call.1} parent=1 // pred_fallthru
      _
    // Predicated region
    $region10: #{tpu_custom_call.1} parent=1 // pred_check
      _
    $region11: #{tpu_custom_call.1} parent=1 // pred_check_branch
      %26 = sbr.rel (0) target = $region13
    $region12: #{tpu_custom_call.1} parent=1 // pred_region
      _
    $region13: #{tpu_custom_call.1} parent=1 // pred_fallthru
      _
    // Predicated region
    $region14: #{tpu_custom_call.1} parent=1 // pred_check
      _
    $region15: #{tpu_custom_call.1} parent=1 // pred_check_branch
      %28 = sbr.rel (0) target = $region17
    $region16: #{tpu_custom_call.1} parent=1 // pred_region
      _
    $region17: #{tpu_custom_call.1} parent=1 // pred_fallthru
      _
    // Predicated region
    $region18: #{tpu_custom_call.1} parent=1 // pred_check
      _
    $region19: #{tpu_custom_call.1} parent=1 // pred_check_branch
      %30 = sbr.rel (0) target = $region21
    $region20: #{tpu_custom_call.1} parent=1 // pred_region
      _
    $region21: #{tpu_custom_call.1} parent=1 // pred_fallthru
      _
    // Predicated region
    $region22: #{tpu_custom_call.1} parent=1 // pred_check
      _
    $region23: #{tpu_custom_call.1} parent=1 // pred_check_branch
      %32 = sbr.rel (0) target = $region25
    $region24: #{tpu_custom_call.1} parent=1 // pred_region
      _
    $region25: #{tpu_custom_call.1} parent=1 // pred_fallthru
      _
    // Predicated region
    $region26: #{tpu_custom_call.1} parent=1 // pred_check
      _
    $region27: #{tpu_custom_call.1} parent=1 // pred_check_branch
      %34 = sbr.rel (0) target = $region29
    $region28: #{tpu_custom_call.1} parent=1 // pred_region
      _
    $region29: #{tpu_custom_call.1} parent=1 // pred_fallthru
      _
    // Predicated region
    $region30: #{tpu_custom_call.1} parent=1 // pred_check
      _
    $region31: #{tpu_custom_call.1} parent=1 // pred_check_branch
      %36 = sbr.rel (0) target = $region33
    $region32: #{tpu_custom_call.1} parent=1 // pred_region
      _
    $region33: #{tpu_custom_call.1} parent=1 // pred_fallthru
      _
    // Predicated region
    $region34: #{tpu_custom_call.1} parent=1 // pred_check
      _
    $region35: #{tpu_custom_call.1} parent=1 // pred_check_branch
      %38 = sbr.rel (0) target = $region37
    $region36: #{tpu_custom_call.1} parent=1 // pred_region
      _
    $region37: #{tpu_custom_call.1} parent=1 // pred_fallthru
      _
    // Predicated region
    $region38: #{tpu_custom_call.1} parent=1 // pred_check
      _
    $region39: #{tpu_custom_call.1} parent=1 // pred_check_branch
      %40 = sbr.rel (0) target = $region41
    $region40: #{tpu_custom_call.1} parent=1 // pred_region
      _
    $region41: #{tpu_custom_call.1} parent=1 // pred_fallthru
      _
    // Predicated region
    $region42: #{tpu_custom_call.1} parent=1 // pred_check
      _
    $region43: #{tpu_custom_call.1} parent=1 // pred_check_branch
      %42 = sbr.rel (0) target = $region45
    $region44: #{tpu_custom_call.1} parent=1 // pred_region
      _
    $region45: #{tpu_custom_call.1} parent=1 // pred_fallthru
      _
    // Predicated region
    $region46: #{tpu_custom_call.1} parent=1 // pred_check
      _
    $region47: #{tpu_custom_call.1} parent=1 // pred_check_branch
      %44 = sbr.rel (0) target = $region49
    $region48: #{tpu_custom_call.1} parent=1 // pred_region
      _
    $region49: #{tpu_custom_call.1} parent=1 // pred_fallthru
      _
    // Predicated region
    $region50: #{tpu_custom_call.1} parent=1 // pred_check
      _
    $region51: #{tpu_custom_call.1} parent=1 // pred_check_branch
      %46 = sbr.rel (0) target = $region53
    $region52: #{tpu_custom_call.1} parent=1 // pred_region
      _
    $region53: #{tpu_custom_call.1} parent=1 // pred_fallthru
      _
    // Predicated region
    $region54: #{tpu_custom_call.1} parent=1 // pred_check
      _
    $region55: #{tpu_custom_call.1} parent=1 // pred_check_branch
      %48 = sbr.rel (0) target = $region57
    $region56: #{tpu_custom_call.1} parent=1 // pred_region
      _
    $region57: #{tpu_custom_call.1} parent=1 // pred_fallthru
      _
    // Predicated region
    $region58: #{tpu_custom_call.1} parent=1 // pred_check
      _
    $region59: #{tpu_custom_call.1} parent=1 // pred_check_branch
      %50 = sbr.rel (0) target = $region61
    $region60: #{tpu_custom_call.1} parent=1 // pred_region
      _
    $region61: #{tpu_custom_call.1} parent=1 // pred_fallthru
      _
    %v52 = vld [vmem:[%s3] sm:$0xf]
    %v53 = vld [vmem:[%s3 + $0x4] sm:$0xf]
    %v54 = vld [vmem:[%s3 + $0x8] sm:$0xf]
    %v55 = vld [vmem:[%s3 + $0xc] sm:$0xf]
    %v56 = vld [vmem:[%s3 + $0x10] sm:$0xf]
    %v57 = vld [vmem:[%s3 + $0x14] sm:$0xf]
    %v58 = vld [vmem:[%s3 + $0x18] sm:$0xf]
    %v59 = vld [vmem:[%s3 + $0x1c] sm:$0xf]
    %v60 = vld [vmem:[%s4] sm:$0x1]
    %v61 = vld [vmem:[%s4 + $0x1] sm:$0x1]
    %v62 = vld [vmem:[%s5] sm:$0xf]
    %v63 = vld [vmem:[%s5 + $0x4] sm:$0xf]
    %v64 = vld [vmem:[%s5 + $0x8] sm:$0xf]
    %v65 = vld [vmem:[%s5 + $0xc] sm:$0xf]
    %v66 = vld [vmem:[%s5 + $0x10] sm:$0xf]
    %v67 = vld [vmem:[%s5 + $0x14] sm:$0xf]
    %v68 = vld [vmem:[%s5 + $0x18] sm:$0xf]
    %v69 = vld [vmem:[%s5 + $0x1c] sm:$0xf]
    %v70 = vld [vmem:[%s6] sm:$0x1]
    %v71 = vld [vmem:[%s6 + $0x1] sm:$0x1]
    %v72 = vld [vmem:[%s7] sm:$0x1]
    %v73 = vld [vmem:[%s7 + $0x1] sm:$0x1]
    %v74 = vld [vmem:[%s8] sm:$0x1]
    %v75 = vld [vmem:[%s8 + $0x1] sm:$0x1]
    %v76 = vld [vmem:[%s9] sm:$0xf]
    %v77 = vld [vmem:[%s9 + $0x4] sm:$0xf]
    %v78 = vld [vmem:[%s9 + $0x8] sm:$0xf]
    %v79 = vld [vmem:[%s9 + $0xc] sm:$0xf]
    %v80 = vld [vmem:[%s9 + $0x10] sm:$0xf]
    %v81 = vld [vmem:[%s9 + $0x14] sm:$0xf]
    %v82 = vld [vmem:[%s9 + $0x18] sm:$0xf]
    %v83 = vld [vmem:[%s9 + $0x1c] sm:$0xf]
    %v84 = vld [vmem:[%s10] sm:$0x1]
    %v85 = vld [vmem:[%s10 + $0x1] sm:$0x1]
    %v86 = vld [vmem:[%s11] sm:$0xf]
    %v87 = vld [vmem:[%s11 + $0x4] sm:$0xf]
    %v88 = vld [vmem:[%s11 + $0x8] sm:$0xf]
    %v89 = vld [vmem:[%s11 + $0xc] sm:$0xf]
    %v90 = vld [vmem:[%s11 + $0x10] sm:$0xf]
    %v91 = vld [vmem:[%s11 + $0x14] sm:$0xf]
    %v92 = vld [vmem:[%s11 + $0x18] sm:$0xf]
    %v93 = vld [vmem:[%s11 + $0x1c] sm:$0xf]
    %v94 = vld [vmem:[%s11 + $0x20] sm:$0xf]
    %v95 = vld [vmem:[%s11 + $0x24] sm:$0xf]
    %v96 = vld [vmem:[%s11 + $0x28] sm:$0xf]
    %v97 = vld [vmem:[%s11 + $0x2c] sm:$0xf]
    %v98 = vld [vmem:[%s11 + $0x30] sm:$0xf]
    %v99 = vld [vmem:[%s11 + $0x34] sm:$0xf]
    %v100 = vld [vmem:[%s11 + $0x38] sm:$0xf]
    %v101 = vld [vmem:[%s11 + $0x3c] sm:$0xf]
    %v102 = vld [vmem:[%s11 + $0x40] sm:$0xf]
    %v103 = vld [vmem:[%s11 + $0x44] sm:$0xf]
    %v104 = vld [vmem:[%s11 + $0x48] sm:$0xf]
    %v105 = vld [vmem:[%s11 + $0x4c] sm:$0xf]
    %v106 = vld [vmem:[%s11 + $0x50] sm:$0xf]
    %v107 = vld [vmem:[%s11 + $0x54] sm:$0xf]
    %v108 = vld [vmem:[%s11 + $0x58] sm:$0xf]
    %v109 = vld [vmem:[%s11 + $0x5c] sm:$0xf]
    %v110 = vld [vmem:[%s11 + $0x60] sm:$0xf]
    %v111 = vld [vmem:[%s11 + $0x64] sm:$0xf]
    %v112 = vld [vmem:[%s11 + $0x68] sm:$0xf]
    %v113 = vld [vmem:[%s11 + $0x6c] sm:$0xf]
    %v114 = vld [vmem:[%s11 + $0x70] sm:$0xf]
    %v115 = vld [vmem:[%s11 + $0x74] sm:$0xf]
    %v116 = vld [vmem:[%s11 + $0x78] sm:$0xf]
    %v117 = vld [vmem:[%s11 + $0x7c] sm:$0xf]
    %v118 = vld [vmem:[%s12] sm:$0x1]
    %v119 = vld [vmem:[%s12 + $0x1] sm:$0x1]
    %v120 = vld [vmem:[%s13] sm:$0x1]
    %v121 = vld [vmem:[%s13 + $0x1] sm:$0x1]
    %v122 = vld [vmem:[%s14] sm:$0x1]
    %v123 = vld [vmem:[%s14 + $0x1] sm:$0x1]
    %v124 = vld [vmem:[%s0] sm:$0xff]
    %v125 = vld [vmem:[%s0 + $0x8] sm:$0xff]
    %v126 = vld [vmem:[%s0 + $0x10] sm:$0xff]
    %v127 = vld [vmem:[%s0 + $0x18] sm:$0xff]
    %v128 = vld [vmem:[%s1] sm:$0xff]
    %v129 = vld [vmem:[%s1 + $0x8] sm:$0xff]
    %v130 = vld [vmem:[%s2] sm:$0x3]
    %v132 = vrot.slane %v130, 1
    %v133 = vperm.slane %v130, 0
    %v134 = vperm.slane %v132, 0
    %v137 = vadd.f32 %v128, %v133
    %v138 = vadd.f32 %v129, %v133
    %v139 = vadd.f32 %v128, %v134
    %v140 = vadd.f32 %v129, %v134
    %v141 = vpack.c.bf16 %v125, %v124
    %v142 = vpack.c.bf16 %v127, %v126
    %v144 = vperm.slane %v60, 0
    %v150 = vunpack.c.l.b16 %v52
    %v151 = vunpack.c.l.b16 %v53
    %v152 = vunpack.c.l.b16 %v54
    %v153 = vunpack.c.l.b16 %v55
    %v154 = vpack.c.b16 %v151, %v150
    %v155 = vpack.c.b16 %v153, %v152
    %vm158 = vcmask 261120
    %v160 = vsel %vm158, %v141, 0
    %v163 = vsel %vm158, %v142, 0
    %165 = vmatpush.bf16.msra.mxu0 0
    %166 = vmatpush.bf16.msra.mxu0 0
    %167 = vmatpush.bf16.msra.mxu0 0
    %168 = vmatpush.bf16.msra.mxu0 0
    %169 = vmatpush.bf16.msra.mxu0 0
    %170 = vmatpush.bf16.msra.mxu0 0
    %171 = vmatpush.bf16.msra.mxu0 %v155
    %172 = vmatpush.bf16.msra.mxu0 %v154
    %173 = vmatmul.bf16.gmra.mxu0 %v160
    %v174 = vpop.f32.mrf.mxu0
    %v175 = vadd.f32 %v144, %v174
    %v176 = vpop.f32.mrf.mxu0
    %v177 = vadd.f32 %v144, %v176
    %178 = vmatmul.bf16.gmra.mxu0 %v163
    %v179 = vpop.f32.mrf.mxu0
    %v180 = vadd.f32 %v144, %v179
    %v181 = vpop.f32.mrf.mxu0
    %v182 = vadd.f32 %v144, %v181
    %183 = vdwg.mxu0
    %v184 = vmul.f32 %v175, 0.35355338
    %v185 = vmul.f32 %v177, 0.35355338
    %v186 = vmul.f32 %v180, 0.35355338
    %v187 = vmul.f32 %v182, 0.35355338
    %v188 = vpack.c.bf16 %v184, %v184
    %v189 = vpack.c.bf16 %v185, %v185
    %v190 = vpack.c.bf16 %v186, %v186
    %v191 = vpack.c.bf16 %v187, %v187
    %v192 = vpack.c.bf16 %v175, %v175
    %v193 = vpack.c.bf16 %v177, %v177
    %v194 = vpack.c.bf16 %v180, %v180
    %v195 = vpack.c.bf16 %v182, %v182
    %v198 = vunpack.c.l.b16 %v188
    %v199 = vunpack.c.l.b16 %v189
    %v200 = vpack.c.b16 %v199, %v198
    %v203 = vunpack.c.l.b16 %v192
    %v204 = vunpack.c.l.b16 %v193
    %v205 = vpack.c.b16 %v204, %v203
    %206 = vrot.lane.b32.xlu0 %v205, 96
    %v207 = vpop.permute.xlu0 %206
    %vm208 = vcmask 64512
    %v210 = vsel %vm208, %v200, 0
    %v213 = vsel %vm208, %v207, 0
    %215 = vmatpush.bf16.xpose.msra.mxu0 0
    %216 = vmatpush.bf16.xpose.msra.mxu0 0
    %217 = vmatpush.bf16.xpose.msra.mxu0 0
    %218 = vmatpush.bf16.xpose.msra.mxu0 0
    %219 = vmatpush.bf16.xpose.msra.mxu0 0
    %220 = vmatpush.bf16.xpose.msra.mxu0 0
    %221 = vmatpush.bf16.xpose.msra.mxu0 0
    %222 = vmatpush.bf16.xpose.msra.mxu0 %v213
    %223 = vmatmul.bf16.gmra.mxu0 %v210
    %v224 = vpop.f32.mrf.mxu0
    %v225 = vadd.f32 %v137, %v224
    %v226 = vpop.f32.mrf.mxu0
    %v227 = vadd.f32 %v138, %v226
    %228 = vdwg.mxu0
    %v231 = vunpack.c.l.b16 %v190
    %v232 = vunpack.c.l.b16 %v191
    %v233 = vpack.c.b16 %v232, %v231
    %v236 = vunpack.c.l.b16 %v194
    %v237 = vunpack.c.l.b16 %v195
    %v238 = vpack.c.b16 %v237, %v236
    %239 = vrot.lane.b32.xlu0 %v238, 96
    %v240 = vpop.permute.xlu0 %239
    %v242 = vsel %vm208, %v233, 0
    %v245 = vsel %vm208, %v240, 0
    %247 = vmatpush.bf16.xpose.msra.mxu0 0
    %248 = vmatpush.bf16.xpose.msra.mxu0 0
    %249 = vmatpush.bf16.xpose.msra.mxu0 0
    %250 = vmatpush.bf16.xpose.msra.mxu0 0
    %251 = vmatpush.bf16.xpose.msra.mxu0 0
    %252 = vmatpush.bf16.xpose.msra.mxu0 0
    %253 = vmatpush.bf16.xpose.msra.mxu0 0
    %254 = vmatpush.bf16.xpose.msra.mxu0 %v245
    %255 = vmatmul.bf16.gmra.mxu0 %v242
    %v256 = vpop.f32.mrf.mxu0
    %v257 = vadd.f32 %v139, %v256
    %v258 = vpop.f32.mrf.mxu0
    %v259 = vadd.f32 %v140, %v258
    %260 = vdwg.mxu0
    %vm261 = vcmask 130048
    %v262 = vsel %vm261, %v225, -inf
    %263 = vmax.xlane.f32.xlu0 %v262
    %v264 = vpop.xlane.xlu0 %263
    %v265 = vsel %vm261, %v227, -inf
    %266 = vmax.xlane.f32.xlu0 %v265
    %v267 = vpop.xlane.xlu0 %266
    %v268 = vsel %vm261, %v257, -inf
    %269 = vmax.xlane.f32.xlu0 %v268
    %v270 = vpop.xlane.xlu0 %269
    %v271 = vsel %vm261, %v259, -inf
    %272 = vmax.xlane.f32.xlu0 %v271
    %v273 = vpop.xlane.xlu0 %272
    %v274 = vsub.f32 %v225, %v264
    %v275 = vsub.f32 %v227, %v267
    %v276 = vsub.f32 %v257, %v270
    %v277 = vsub.f32 %v259, %v273
    %v278 = vmul.f32 %v274, 1.442695
    %v279 = vpow.pop %v278
    %v280 = vmul.f32 %v275, 1.442695
    %v281 = vpow.pop %v280
    %v282 = vmul.f32 %v276, 1.442695
    %v283 = vpow.pop %v282
    %v284 = vmul.f32 %v277, 1.442695
    %v285 = vpow.pop %v284
    %v286 = vsel %vm261, %v279, 0.0
    %287 = vadd.xlane.f32.xlu0 %v286
    %v288 = vpop.xlane.xlu0 %287
    %v289 = vsel %vm261, %v281, 0.0
    %290 = vadd.xlane.f32.xlu0 %v289
    %v291 = vpop.xlane.xlu0 %290
    %v292 = vsel %vm261, %v283, 0.0
    %293 = vadd.xlane.f32.xlu0 %v292
    %v294 = vpop.xlane.xlu0 %293
    %v295 = vsel %vm261, %v285, 0.0
    %296 = vadd.xlane.f32.xlu0 %v295
    %v297 = vpop.xlane.xlu0 %296
    %v298 = vrcp.pop %v288
    %v299 = vrcp.pop %v291
    %v300 = vrcp.pop %v294
    %v301 = vrcp.pop %v297
    %v302 = vmul.f32 %v279, %v298
    %v303 = vmul.f32 %v281, %v299
    %v304 = vmul.f32 %v283, %v300
    %v305 = vmul.f32 %v285, %v301
    %v306 = vpack.c.bf16 %v302, %v302
    %v307 = vpack.c.bf16 %v303, %v303
    %v308 = vpack.c.bf16 %v304, %v304
    %v309 = vpack.c.bf16 %v305, %v305
    %v312 = vunpack.c.l.b16 %v306
    %v313 = vunpack.c.l.b16 %v307
    %v314 = vpack.c.b16 %v313, %v312
    %315 = vrot.lane.b32.xlu0 %v205, 64
    %v316 = vpop.permute.xlu0 %315
    %v319 = vsel %vm261, %v314, 0
    %321 = vmatpush.bf16.msra.mxu0 0
    %322 = vmatpush.bf16.msra.mxu0 0
    %323 = vmatpush.bf16.msra.mxu0 0
    %324 = vmatpush.bf16.msra.mxu0 0
    %325 = vmatpush.bf16.msra.mxu0 0
    %326 = vmatpush.bf16.msra.mxu0 0
    %327 = vmatpush.bf16.msra.mxu0 0
    %328 = vmatpush.bf16.msra.mxu0 %v316
    %329 = vmatmul.bf16.gmra.mxu0 %v319
    %v330 = vpop.f32.mrf.mxu0
    %v331 = vadd.f32 0.0, %v330
    %v332 = vpop.f32.mrf.mxu0
    %v333 = vadd.f32 0.0, %v332
    %334 = vdwg.mxu0
    %v337 = vunpack.c.l.b16 %v308
    %v338 = vunpack.c.l.b16 %v309
    %v339 = vpack.c.b16 %v338, %v337
    %340 = vrot.lane.b32.xlu0 %v238, 64
    %v341 = vpop.permute.xlu0 %340
    %v344 = vsel %vm261, %v339, 0
    %346 = vmatpush.bf16.msra.mxu0 0
    %347 = vmatpush.bf16.msra.mxu0 0
    %348 = vmatpush.bf16.msra.mxu0 0
    %349 = vmatpush.bf16.msra.mxu0 0
    %350 = vmatpush.bf16.msra.mxu0 0
    %351 = vmatpush.bf16.msra.mxu0 0
    %352 = vmatpush.bf16.msra.mxu0 0
    %353 = vmatpush.bf16.msra.mxu0 %v341
    %354 = vmatmul.bf16.gmra.mxu0 %v344
    %v355 = vpop.f32.mrf.mxu0
    %v356 = vadd.f32 0.0, %v355
    %v357 = vpop.f32.mrf.mxu0
    %v358 = vadd.f32 0.0, %v357
    %359 = vdwg.mxu0
    %360 = vrot.lane.b32.xlu0 %v200, 120
    %v361 = vpop.permute.xlu0 %360
    %362 = vrot.lane.b32.xlu0 %v205, 88
    %v363 = vpop.permute.xlu0 %362
    %v365 = vsel %vm208, %v361, 0
    %v368 = vsel %vm208, %v363, 0
    %370 = vmatpush.bf16.xpose.msra.mxu0 0
    %371 = vmatpush.bf16.xpose.msra.mxu0 0
    %372 = vmatpush.bf16.xpose.msra.mxu0 0
    %373 = vmatpush.bf16.xpose.msra.mxu0 0
    %374 = vmatpush.bf16.xpose.msra.mxu0 0
    %375 = vmatpush.bf16.xpose.msra.mxu0 0
    %376 = vmatpush.bf16.xpose.msra.mxu0 0
    %377 = vmatpush.bf16.xpose.msra.mxu0 %v368
    %378 = vmatmul.bf16.gmra.mxu0 %v365
    %v379 = vpop.f32.mrf.mxu0
    %v380 = vadd.f32 %v137, %v379
    %v381 = vpop.f32.mrf.mxu0
    %v382 = vadd.f32 %v138, %v381
    %383 = vdwg.mxu0
    %384 = vrot.lane.b32.xlu0 %v233, 120
    %v385 = vpop.permute.xlu0 %384
    %386 = vrot.lane.b32.xlu0 %v238, 88
    %v387 = vpop.permute.xlu0 %386
    %v389 = vsel %vm208, %v385, 0
    %v392 = vsel %vm208, %v387, 0
    %394 = vmatpush.bf16.xpose.msra.mxu0 0
    %395 = vmatpush.bf16.xpose.msra.mxu0 0
    %396 = vmatpush.bf16.xpose.msra.mxu0 0
    %397 = vmatpush.bf16.xpose.msra.mxu0 0
    %398 = vmatpush.bf16.xpose.msra.mxu0 0
    %399 = vmatpush.bf16.xpose.msra.mxu0 0
    %400 = vmatpush.bf16.xpose.msra.mxu0 0
    %401 = vmatpush.bf16.xpose.msra.mxu0 %v392
    %402 = vmatmul.bf16.gmra.mxu0 %v389
    %v403 = vpop.f32.mrf.mxu0
    %v404 = vadd.f32 %v139, %v403
    %v405 = vpop.f32.mrf.mxu0
    %v406 = vadd.f32 %v140, %v405
    %407 = vdwg.mxu0
    %v408 = vsel %vm261, %v380, -inf
    %409 = vmax.xlane.f32.xlu0 %v408
    %v410 = vpop.xlane.xlu0 %409
    %v411 = vsel %vm261, %v382, -inf
    %412 = vmax.xlane.f32.xlu0 %v411
    %v413 = vpop.xlane.xlu0 %412
    %v414 = vsel %vm261, %v404, -inf
    %415 = vmax.xlane.f32.xlu0 %v414
    %v416 = vpop.xlane.xlu0 %415
    %v417 = vsel %vm261, %v406, -inf
    %418 = vmax.xlane.f32.xlu0 %v417
    %v419 = vpop.xlane.xlu0 %418
    %v420 = vsub.f32 %v380, %v410
    %v421 = vsub.f32 %v382, %v413
    %v422 = vsub.f32 %v404, %v416
    %v423 = vsub.f32 %v406, %v419
    %v424 = vmul.f32 %v420, 1.442695
    %v425 = vpow.pop %v424
    %v426 = vmul.f32 %v421, 1.442695
    %v427 = vpow.pop %v426
    %v428 = vmul.f32 %v422, 1.442695
    %v429 = vpow.pop %v428
    %v430 = vmul.f32 %v423, 1.442695
    %v431 = vpow.pop %v430
    %v432 = vsel %vm261, %v425, 0.0
    %433 = vadd.xlane.f32.xlu0 %v432
    %v434 = vpop.xlane.xlu0 %433
    %v435 = vsel %vm261, %v427, 0.0
    %436 = vadd.xlane.f32.xlu0 %v435
    %v437 = vpop.xlane.xlu0 %436
    %v438 = vsel %vm261, %v429, 0.0
    %439 = vadd.xlane.f32.xlu0 %v438
    %v440 = vpop.xlane.xlu0 %439
    %v441 = vsel %vm261, %v431, 0.0
    %442 = vadd.xlane.f32.xlu0 %v441
    %v443 = vpop.xlane.xlu0 %442
    %v444 = vrcp.pop %v434
    %v445 = vrcp.pop %v437
    %v446 = vrcp.pop %v440
    %v447 = vrcp.pop %v443
    %v448 = vmul.f32 %v425, %v444
    %v449 = vmul.f32 %v427, %v445
    %v450 = vmul.f32 %v429, %v446
    %v451 = vmul.f32 %v431, %v447
    %v452 = vpack.c.bf16 %v448, %v448
    %v453 = vpack.c.bf16 %v449, %v449
    %v454 = vpack.c.bf16 %v450, %v450
    %v455 = vpack.c.bf16 %v451, %v451
    %v458 = vunpack.c.l.b16 %v452
    %v459 = vunpack.c.l.b16 %v453
    %v460 = vpack.c.b16 %v459, %v458
    %461 = vrot.lane.b32.xlu0 %v205, 56
    %v462 = vpop.permute.xlu0 %461
    %v465 = vsel %vm261, %v460, 0
    %467 = vmatpush.bf16.msra.mxu0 0
    %468 = vmatpush.bf16.msra.mxu0 0
    %469 = vmatpush.bf16.msra.mxu0 0
    %470 = vmatpush.bf16.msra.mxu0 0
    %471 = vmatpush.bf16.msra.mxu0 0
    %472 = vmatpush.bf16.msra.mxu0 0
    %473 = vmatpush.bf16.msra.mxu0 0
    %474 = vmatpush.bf16.msra.mxu0 %v462
    %475 = vmatmul.bf16.gmra.mxu0 %v465
    %v476 = vpop.f32.mrf.mxu0
    %v477 = vadd.f32 0.0, %v476
    %v478 = vpop.f32.mrf.mxu0
    %v479 = vadd.f32 0.0, %v478
    %480 = vdwg.mxu0
    %v483 = vunpack.c.l.b16 %v454
    %v484 = vunpack.c.l.b16 %v455
    %v485 = vpack.c.b16 %v484, %v483
    %486 = vrot.lane.b32.xlu0 %v238, 56
    %v487 = vpop.permute.xlu0 %486
    %v490 = vsel %vm261, %v485, 0
    %492 = vmatpush.bf16.msra.mxu0 0
    %493 = vmatpush.bf16.msra.mxu0 0
    %494 = vmatpush.bf16.msra.mxu0 0
    %495 = vmatpush.bf16.msra.mxu0 0
    %496 = vmatpush.bf16.msra.mxu0 0
    %497 = vmatpush.bf16.msra.mxu0 0
    %498 = vmatpush.bf16.msra.mxu0 0
    %499 = vmatpush.bf16.msra.mxu0 %v487
    %500 = vmatmul.bf16.gmra.mxu0 %v490
    %v501 = vpop.f32.mrf.mxu0
    %v502 = vadd.f32 0.0, %v501
    %v503 = vpop.f32.mrf.mxu0
    %v504 = vadd.f32 0.0, %v503
    %505 = vdwg.mxu0
    %506 = vrot.lane.b32.xlu0 %v200, 112
    %v507 = vpop.permute.xlu0 %506
    %508 = vrot.lane.b32.xlu0 %v205, 80
    %v509 = vpop.permute.xlu0 %508
    %v511 = vsel %vm208, %v507, 0
    %v514 = vsel %vm208, %v509, 0
    %516 = vmatpush.bf16.xpose.msra.mxu0 0
    %517 = vmatpush.bf16.xpose.msra.mxu0 0
    %518 = vmatpush.bf16.xpose.msra.mxu0 0
    %519 = vmatpush.bf16.xpose.msra.mxu0 0
    %520 = vmatpush.bf16.xpose.msra.mxu0 0
    %521 = vmatpush.bf16.xpose.msra.mxu0 0
    %522 = vmatpush.bf16.xpose.msra.mxu0 0
    %523 = vmatpush.bf16.xpose.msra.mxu0 %v514
    %524 = vmatmul.bf16.gmra.mxu0 %v511
    %v525 = vpop.f32.mrf.mxu0
    %v526 = vadd.f32 %v137, %v525
    %v527 = vpop.f32.mrf.mxu0
    %v528 = vadd.f32 %v138, %v527
    %529 = vdwg.mxu0
    %530 = vrot.lane.b32.xlu0 %v233, 112
    %v531 = vpop.permute.xlu0 %530
    %532 = vrot.lane.b32.xlu0 %v238, 80
    %v533 = vpop.permute.xlu0 %532
    %v535 = vsel %vm208, %v531, 0
    %v538 = vsel %vm208, %v533, 0
    %540 = vmatpush.bf16.xpose.msra.mxu0 0
    %541 = vmatpush.bf16.xpose.msra.mxu0 0
    %542 = vmatpush.bf16.xpose.msra.mxu0 0
    %543 = vmatpush.bf16.xpose.msra.mxu0 0
    %544 = vmatpush.bf16.xpose.msra.mxu0 0
    %545 = vmatpush.bf16.xpose.msra.mxu0 0
    %546 = vmatpush.bf16.xpose.msra.mxu0 0
    %547 = vmatpush.bf16.xpose.msra.mxu0 %v538
    %548 = vmatmul.bf16.gmra.mxu0 %v535
    %v549 = vpop.f32.mrf.mxu0
    %v550 = vadd.f32 %v139, %v549
    %v551 = vpop.f32.mrf.mxu0
    %v552 = vadd.f32 %v140, %v551
    %553 = vdwg.mxu0
    %v554 = vsel %vm261, %v526, -inf
    %555 = vmax.xlane.f32.xlu0 %v554
    %v556 = vpop.xlane.xlu0 %555
    %v557 = vsel %vm261, %v528, -inf
    %558 = vmax.xlane.f32.xlu0 %v557
    %v559 = vpop.xlane.xlu0 %558
    %v560 = vsel %vm261, %v550, -inf
    %561 = vmax.xlane.f32.xlu0 %v560
    %v562 = vpop.xlane.xlu0 %561
    %v563 = vsel %vm261, %v552, -inf
    %564 = vmax.xlane.f32.xlu0 %v563
    %v565 = vpop.xlane.xlu0 %564
    %v566 = vsub.f32 %v526, %v556
    %v567 = vsub.f32 %v528, %v559
    %v568 = vsub.f32 %v550, %v562
    %v569 = vsub.f32 %v552, %v565
    %v570 = vmul.f32 %v566, 1.442695
    %v571 = vpow.pop %v570
    %v572 = vmul.f32 %v567, 1.442695
    %v573 = vpow.pop %v572
    %v574 = vmul.f32 %v568, 1.442695
    %v575 = vpow.pop %v574
    %v576 = vmul.f32 %v569, 1.442695
    %v577 = vpow.pop %v576
    %v578 = vsel %vm261, %v571, 0.0
    %579 = vadd.xlane.f32.xlu0 %v578
    %v580 = vpop.xlane.xlu0 %579
    %v581 = vsel %vm261, %v573, 0.0
    %582 = vadd.xlane.f32.xlu0 %v581
    %v583 = vpop.xlane.xlu0 %582
    %v584 = vsel %vm261, %v575, 0.0
    %585 = vadd.xlane.f32.xlu0 %v584
    %v586 = vpop.xlane.xlu0 %585
    %v587 = vsel %vm261, %v577, 0.0
    %588 = vadd.xlane.f32.xlu0 %v587
    %v589 = vpop.xlane.xlu0 %588
    %v590 = vrcp.pop %v580
    %v591 = vrcp.pop %v583
    %v592 = vrcp.pop %v586
    %v593 = vrcp.pop %v589
    %v594 = vmul.f32 %v571, %v590
    %v595 = vmul.f32 %v573, %v591
    %v596 = vmul.f32 %v575, %v592
    %v597 = vmul.f32 %v577, %v593
    %v598 = vpack.c.bf16 %v594, %v594
    %v599 = vpack.c.bf16 %v595, %v595
    %v600 = vpack.c.bf16 %v596, %v596
    %v601 = vpack.c.bf16 %v597, %v597
    %v604 = vunpack.c.l.b16 %v598
    %v605 = vunpack.c.l.b16 %v599
    %v606 = vpack.c.b16 %v605, %v604
    %607 = vrot.lane.b32.xlu0 %v205, 48
    %v608 = vpop.permute.xlu0 %607
    %v611 = vsel %vm261, %v606, 0
    %613 = vmatpush.bf16.msra.mxu0 0
    %614 = vmatpush.bf16.msra.mxu0 0
    %615 = vmatpush.bf16.msra.mxu0 0
    %616 = vmatpush.bf16.msra.mxu0 0
    %617 = vmatpush.bf16.msra.mxu0 0
    %618 = vmatpush.bf16.msra.mxu0 0
    %619 = vmatpush.bf16.msra.mxu0 0
    %620 = vmatpush.bf16.msra.mxu0 %v608
    %621 = vmatmul.bf16.gmra.mxu0 %v611
    %v622 = vpop.f32.mrf.mxu0
    %v623 = vadd.f32 0.0, %v622
    %v624 = vpop.f32.mrf.mxu0
    %v625 = vadd.f32 0.0, %v624
    %626 = vdwg.mxu0
    %v629 = vunpack.c.l.b16 %v600
    %v630 = vunpack.c.l.b16 %v601
    %v631 = vpack.c.b16 %v630, %v629
    %632 = vrot.lane.b32.xlu0 %v238, 48
    %v633 = vpop.permute.xlu0 %632
    %v636 = vsel %vm261, %v631, 0
    %638 = vmatpush.bf16.msra.mxu0 0
    %639 = vmatpush.bf16.msra.mxu0 0
    %640 = vmatpush.bf16.msra.mxu0 0
    %641 = vmatpush.bf16.msra.mxu0 0
    %642 = vmatpush.bf16.msra.mxu0 0
    %643 = vmatpush.bf16.msra.mxu0 0
    %644 = vmatpush.bf16.msra.mxu0 0
    %645 = vmatpush.bf16.msra.mxu0 %v633
    %646 = vmatmul.bf16.gmra.mxu0 %v636
    %v647 = vpop.f32.mrf.mxu0
    %v648 = vadd.f32 0.0, %v647
    %v649 = vpop.f32.mrf.mxu0
    %v650 = vadd.f32 0.0, %v649
    %651 = vdwg.mxu0
    %652 = vrot.lane.b32.xlu0 %v200, 104
    %v653 = vpop.permute.xlu0 %652
    %654 = vrot.lane.b32.xlu0 %v205, 72
    %v655 = vpop.permute.xlu0 %654
    %v657 = vsel %vm208, %v653, 0
    %v660 = vsel %vm208, %v655, 0
    %662 = vmatpush.bf16.xpose.msra.mxu0 0
    %663 = vmatpush.bf16.xpose.msra.mxu0 0
    %664 = vmatpush.bf16.xpose.msra.mxu0 0
    %665 = vmatpush.bf16.xpose.msra.mxu0 0
    %666 = vmatpush.bf16.xpose.msra.mxu0 0
    %667 = vmatpush.bf16.xpose.msra.mxu0 0
    %668 = vmatpush.bf16.xpose.msra.mxu0 0
    %669 = vmatpush.bf16.xpose.msra.mxu0 %v660
    %670 = vmatmul.bf16.gmra.mxu0 %v657
    %v671 = vpop.f32.mrf.mxu0
    %v672 = vadd.f32 %v137, %v671
    %v673 = vpop.f32.mrf.mxu0
    %v674 = vadd.f32 %v138, %v673
    %675 = vdwg.mxu0
    %676 = vrot.lane.b32.xlu0 %v233, 104
    %v677 = vpop.permute.xlu0 %676
    %678 = vrot.lane.b32.xlu0 %v238, 72
    %v679 = vpop.permute.xlu0 %678
    %v681 = vsel %vm208, %v677, 0
    %v684 = vsel %vm208, %v679, 0
    %686 = vmatpush.bf16.xpose.msra.mxu0 0
    %687 = vmatpush.bf16.xpose.msra.mxu0 0
    %688 = vmatpush.bf16.xpose.msra.mxu0 0
    %689 = vmatpush.bf16.xpose.msra.mxu0 0
    %690 = vmatpush.bf16.xpose.msra.mxu0 0
    %691 = vmatpush.bf16.xpose.msra.mxu0 0
    %692 = vmatpush.bf16.xpose.msra.mxu0 0
    %693 = vmatpush.bf16.xpose.msra.mxu0 %v684
    %694 = vmatmul.bf16.gmra.mxu0 %v681
    %v695 = vpop.f32.mrf.mxu0
    %v696 = vadd.f32 %v139, %v695
    %v697 = vpop.f32.mrf.mxu0
    %v698 = vadd.f32 %v140, %v697
    %699 = vdwg.mxu0
    %v700 = vsel %vm261, %v672, -inf
    %701 = vmax.xlane.f32.xlu0 %v700
    %v702 = vpop.xlane.xlu0 %701
    %v703 = vsel %vm261, %v674, -inf
    %704 = vmax.xlane.f32.xlu0 %v703
    %v705 = vpop.xlane.xlu0 %704
    %v706 = vsel %vm261, %v696, -inf
    %707 = vmax.xlane.f32.xlu0 %v706
    %v708 = vpop.xlane.xlu0 %707
    %v709 = vsel %vm261, %v698, -inf
    %710 = vmax.xlane.f32.xlu0 %v709
    %v711 = vpop.xlane.xlu0 %710
    %v712 = vsub.f32 %v672, %v702
    %v713 = vsub.f32 %v674, %v705
    %v714 = vsub.f32 %v696, %v708
    %v715 = vsub.f32 %v698, %v711
    %v716 = vmul.f32 %v712, 1.442695
    %v717 = vpow.pop %v716
    %v718 = vmul.f32 %v713, 1.442695
    %v719 = vpow.pop %v718
    %v720 = vmul.f32 %v714, 1.442695
    %v721 = vpow.pop %v720
    %v722 = vmul.f32 %v715, 1.442695
    %v723 = vpow.pop %v722
    %v724 = vsel %vm261, %v717, 0.0
    %725 = vadd.xlane.f32.xlu0 %v724
    %v726 = vpop.xlane.xlu0 %725
    %v727 = vsel %vm261, %v719, 0.0
    %728 = vadd.xlane.f32.xlu0 %v727
    %v729 = vpop.xlane.xlu0 %728
    %v730 = vsel %vm261, %v721, 0.0
    %731 = vadd.xlane.f32.xlu0 %v730
    %v732 = vpop.xlane.xlu0 %731
    %v733 = vsel %vm261, %v723, 0.0
    %734 = vadd.xlane.f32.xlu0 %v733
    %v735 = vpop.xlane.xlu0 %734
    %v736 = vrcp.pop %v726
    %v737 = vrcp.pop %v729
    %v738 = vrcp.pop %v732
    %v739 = vrcp.pop %v735
    %v740 = vmul.f32 %v717, %v736
    %v741 = vmul.f32 %v719, %v737
    %v742 = vmul.f32 %v721, %v738
    %v743 = vmul.f32 %v723, %v739
    %v744 = vpack.c.bf16 %v740, %v740
    %v745 = vpack.c.bf16 %v741, %v741
    %v746 = vpack.c.bf16 %v742, %v742
    %v747 = vpack.c.bf16 %v743, %v743
    %v750 = vunpack.c.l.b16 %v744
    %v751 = vunpack.c.l.b16 %v745
    %v752 = vpack.c.b16 %v751, %v750
    %753 = vrot.lane.b32.xlu0 %v205, 40
    %v754 = vpop.permute.xlu0 %753
    %v757 = vsel %vm261, %v752, 0
    %759 = vmatpush.bf16.msra.mxu0 0
    %760 = vmatpush.bf16.msra.mxu0 0
    %761 = vmatpush.bf16.msra.mxu0 0
    %762 = vmatpush.bf16.msra.mxu0 0
    %763 = vmatpush.bf16.msra.mxu0 0
    %764 = vmatpush.bf16.msra.mxu0 0
    %765 = vmatpush.bf16.msra.mxu0 0
    %766 = vmatpush.bf16.msra.mxu0 %v754
    %767 = vmatmul.bf16.gmra.mxu0 %v757
    %v768 = vpop.f32.mrf.mxu0
    %v769 = vadd.f32 0.0, %v768
    %v770 = vpop.f32.mrf.mxu0
    %v771 = vadd.f32 0.0, %v770
    %772 = vdwg.mxu0
    %v775 = vunpack.c.l.b16 %v746
    %v776 = vunpack.c.l.b16 %v747
    %v777 = vpack.c.b16 %v776, %v775
    %778 = vrot.lane.b32.xlu0 %v238, 40
    %v779 = vpop.permute.xlu0 %778
    %v782 = vsel %vm261, %v777, 0
    %784 = vmatpush.bf16.msra.mxu0 0
    %785 = vmatpush.bf16.msra.mxu0 0
    %786 = vmatpush.bf16.msra.mxu0 0
    %787 = vmatpush.bf16.msra.mxu0 0
    %788 = vmatpush.bf16.msra.mxu0 0
    %789 = vmatpush.bf16.msra.mxu0 0
    %790 = vmatpush.bf16.msra.mxu0 0
    %791 = vmatpush.bf16.msra.mxu0 %v779
    %792 = vmatmul.bf16.gmra.mxu0 %v782
    %v793 = vpop.f32.mrf.mxu0
    %v794 = vadd.f32 0.0, %v793
    %v795 = vpop.f32.mrf.mxu0
    %v796 = vadd.f32 0.0, %v795
    %797 = vdwg.mxu0
    %802 = vrot.lane.b32.xlu0 %v477, 8
    %v803 = vpop.permute.xlu0 %802
    %804 = vrot.lane.b32.xlu0 %v479, 8
    %v805 = vpop.permute.xlu0 %804
    %806 = vrot.lane.b32.xlu0 %v502, 8
    %v807 = vpop.permute.xlu0 %806
    %808 = vrot.lane.b32.xlu0 %v504, 8
    %v809 = vpop.permute.xlu0 %808
    %818 = vrot.lane.b32.xlu0 %v623, 16
    %v819 = vpop.permute.xlu0 %818
    %820 = vrot.lane.b32.xlu0 %v625, 16
    %v821 = vpop.permute.xlu0 %820
    %822 = vrot.lane.b32.xlu0 %v648, 16
    %v823 = vpop.permute.xlu0 %822
    %824 = vrot.lane.b32.xlu0 %v650, 16
    %v825 = vpop.permute.xlu0 %824
    %834 = vrot.lane.b32.xlu0 %v769, 24
    %v835 = vpop.permute.xlu0 %834
    %836 = vrot.lane.b32.xlu0 %v771, 24
    %v837 = vpop.permute.xlu0 %836
    %838 = vrot.lane.b32.xlu0 %v794, 24
    %v839 = vpop.permute.xlu0 %838
    %840 = vrot.lane.b32.xlu0 %v796, 24
    %v841 = vpop.permute.xlu0 %840
    %v846 = vsel %vm208, %v331, %v803
    %v847 = vsel %vm208, %v333, %v805
    %v848 = vsel %vm208, %v356, %v807
    %v849 = vsel %vm208, %v358, %v809
    %v850 = vsel %vm261, %v846, %v819
    %v851 = vsel %vm261, %v847, %v821
    %v852 = vsel %vm261, %v848, %v823
    %v853 = vsel %vm261, %v849, %v825
    %vm854 = vcmask 195584
    %v855 = vsel %vm854, %v850, %v835
    %v856 = vsel %vm854, %v851, %v837
    %v857 = vsel %vm854, %v852, %v839
    %v858 = vsel %vm854, %v853, %v841
    %v859 = vpack.c.bf16 %v856, %v855
    %v860 = vpack.c.bf16 %v858, %v857
    %v862 = vperm.slane %v70, 0
    %v868 = vunpack.c.l.b16 %v62
    %v869 = vunpack.c.l.b16 %v63
    %v870 = vunpack.c.l.b16 %v64
    %v871 = vunpack.c.l.b16 %v65
    %v872 = vpack.c.b16 %v869, %v868
    %v873 = vpack.c.b16 %v871, %v870
    %v877 = vsel %vm158, %v859, 0
    %v880 = vsel %vm158, %v860, 0
    %882 = vmatpush.bf16.msra.mxu0 0
    %883 = vmatpush.bf16.msra.mxu0 0
    %884 = vmatpush.bf16.msra.mxu0 0
    %885 = vmatpush.bf16.msra.mxu0 0
    %886 = vmatpush.bf16.msra.mxu0 0
    %887 = vmatpush.bf16.msra.mxu0 0
    %888 = vmatpush.bf16.msra.mxu0 %v873
    %889 = vmatpush.bf16.msra.mxu0 %v872
    %890 = vmatmul.bf16.gmra.mxu0 %v877
    %v891 = vpop.f32.mrf.mxu0
    %v892 = vadd.f32 %v862, %v891
    %v893 = vpop.f32.mrf.mxu0
    %v894 = vadd.f32 %v862, %v893
    %895 = vmatmul.bf16.gmra.mxu0 %v880
    %v896 = vpop.f32.mrf.mxu0
    %v897 = vadd.f32 %v862, %v896
    %v898 = vpop.f32.mrf.mxu0
    %v899 = vadd.f32 %v862, %v898
    %900 = vdwg.mxu0
    %v901 = vadd.f32 %v124, %v892
    %v902 = vadd.f32 %v125, %v894
    %v903 = vadd.f32 %v126, %v897
    %v904 = vadd.f32 %v127, %v899
    %v905 = vsel %vm158, %v901, 0.0
    %906 = vadd.xlane.f32.xlu0 %v905
    %v907 = vpop.xlane.xlu0 %906
    %v908 = vsel %vm158, %v902, 0.0
    %909 = vadd.xlane.f32.xlu0 %v908
    %v910 = vpop.xlane.xlu0 %909
    %v911 = vsel %vm158, %v903, 0.0
    %912 = vadd.xlane.f32.xlu0 %v911
    %v913 = vpop.xlane.xlu0 %912
    %v914 = vsel %vm158, %v904, 0.0
    %915 = vadd.xlane.f32.xlu0 %v914
    %v916 = vpop.xlane.xlu0 %915
    %v917 = vrcp.pop 32.0
    %v918 = vmul.f32 32.0, %v917
    %v919 = vsub.f32 1.0, %v918
    %v920 = vmul.f32 %v917, %v919
    %v921 = vadd.f32 %v917, %v920
    %vm922 = vweird.f32 %v917
    %v923 = vsel %vm922, %v917, %v921
    %v924 = vmul.f32 %v907, %v923
    %v925 = vmul.f32 %v910, %v923
    %v926 = vmul.f32 %v913, %v923
    %v927 = vmul.f32 %v916, %v923
    %v928 = vsub.f32 %v901, %v924
    %v929 = vsub.f32 %v902, %v925
    %v930 = vsub.f32 %v903, %v926
    %v931 = vsub.f32 %v904, %v927
    %v932 = vmul.f32 %v928, %v928
    %v933 = vmul.f32 %v929, %v929
    %v934 = vmul.f32 %v930, %v930
    %v935 = vmul.f32 %v931, %v931
    %v936 = vsel %vm158, %v932, 0.0
    %937 = vadd.xlane.f32.xlu0 %v936
    %v938 = vpop.xlane.xlu0 %937
    %v939 = vsel %vm158, %v933, 0.0
    %940 = vadd.xlane.f32.xlu0 %v939
    %v941 = vpop.xlane.xlu0 %940
    %v942 = vsel %vm158, %v934, 0.0
    %943 = vadd.xlane.f32.xlu0 %v942
    %v944 = vpop.xlane.xlu0 %943
    %v945 = vsel %vm158, %v935, 0.0
    %946 = vadd.xlane.f32.xlu0 %v945
    %v947 = vpop.xlane.xlu0 %946
    %v948 = vmul.f32 %v938, %v923
    %v949 = vmul.f32 %v941, %v923
    %v950 = vmul.f32 %v944, %v923
    %v951 = vmul.f32 %v947, %v923
    %v952 = vadd.f32 %v948, 1e-12
    %v953 = vadd.f32 %v949, 1e-12
    %v954 = vadd.f32 %v950, 1e-12
    %v955 = vadd.f32 %v951, 1e-12
    %v956 = vrsqrt.pop %v952
    %v957 = vmul.f32 %v956, %v952
    %v958 = vmul.f32 %v957, %v956
    %v959 = vmul.f32 0.5, %v958
    %v960 = vsub.f32 1.5, %v959
    %v961 = vmul.f32 %v956, %v960
    %vm962 = vweird.f32 %v952
    %vm963 = vweird.f32 %v956
    %vm964 = vmor %vm962, %vm963
    %v965 = vsel %vm964, %v956, %v961
    %v966 = vrsqrt.pop %v953
    %v967 = vmul.f32 %v966, %v953
    %v968 = vmul.f32 %v967, %v966
    %v969 = vmul.f32 0.5, %v968
    %v970 = vsub.f32 1.5, %v969
    %v971 = vmul.f32 %v966, %v970
    %vm972 = vweird.f32 %v953
    %vm973 = vweird.f32 %v966
    %vm974 = vmor %vm972, %vm973
    %v975 = vsel %vm974, %v966, %v971
    %v976 = vrsqrt.pop %v954
    %v977 = vmul.f32 %v976, %v954
    %v978 = vmul.f32 %v977, %v976
    %v979 = vmul.f32 0.5, %v978
    %v980 = vsub.f32 1.5, %v979
    %v981 = vmul.f32 %v976, %v980
    %vm982 = vweird.f32 %v954
    %vm983 = vweird.f32 %v976
    %vm984 = vmor %vm982, %vm983
    %v985 = vsel %vm984, %v976, %v981
    %v986 = vrsqrt.pop %v955
    %v987 = vmul.f32 %v986, %v955
    %v988 = vmul.f32 %v987, %v986
    %v989 = vmul.f32 0.5, %v988
    %v990 = vsub.f32 1.5, %v989
    %v991 = vmul.f32 %v986, %v990
    %vm992 = vweird.f32 %v955
    %vm993 = vweird.f32 %v986
    %vm994 = vmor %vm992, %vm993
    %v995 = vsel %vm994, %v986, %v991
    %v996 = vmul.f32 %v928, %v965
    %v997 = vmul.f32 %v929, %v975
    %v998 = vmul.f32 %v930, %v985
    %v999 = vmul.f32 %v931, %v995
    %v1001 = vperm.slane %v72, 0
    %v1003 = vmul.f32 %v996, %v1001
    %v1004 = vmul.f32 %v997, %v1001
    %v1005 = vmul.f32 %v998, %v1001
    %v1006 = vmul.f32 %v999, %v1001
    %v1008 = vperm.slane %v74, 0
    %v1010 = vadd.f32 %v1003, %v1008
    %v1011 = vadd.f32 %v1004, %v1008
    %v1012 = vadd.f32 %v1005, %v1008
    %v1013 = vadd.f32 %v1006, %v1008
    %v1014 = vpack.c.bf16 %v1011, %v1010
    %v1015 = vpack.c.bf16 %v1013, %v1012
    %v1017 = vperm.slane %v84, 0
    %v1023 = vunpack.c.l.b16 %v76
    %v1024 = vunpack.c.l.b16 %v77
    %v1025 = vunpack.c.l.b16 %v78
    %v1026 = vunpack.c.l.b16 %v79
    %v1027 = vpack.c.b16 %v1024, %v1023
    %v1028 = vpack.c.b16 %v1026, %v1025
    %v1032 = vsel %vm158, %v1014, 0
    %v1035 = vsel %vm158, %v1015, 0
    %1037 = vmatpush.bf16.msra.mxu0 0
    %1038 = vmatpush.bf16.msra.mxu0 0
    %1039 = vmatpush.bf16.msra.mxu0 0
    %1040 = vmatpush.bf16.msra.mxu0 0
    %1041 = vmatpush.bf16.msra.mxu0 0
    %1042 = vmatpush.bf16.msra.mxu0 0
    %1043 = vmatpush.bf16.msra.mxu0 %v1028
    %1044 = vmatpush.bf16.msra.mxu0 %v1027
    %1045 = vmatmul.bf16.gmra.mxu0 %v1032
    %v1046 = vpop.f32.mrf.mxu0
    %v1047 = vadd.f32 %v1017, %v1046
    %v1048 = vpop.f32.mrf.mxu0
    %v1049 = vadd.f32 %v1017, %v1048
    %1050 = vmatmul.bf16.gmra.mxu0 %v1035
    %v1051 = vpop.f32.mrf.mxu0
    %v1052 = vadd.f32 %v1017, %v1051
    %v1053 = vpop.f32.mrf.mxu0
    %v1054 = vadd.f32 %v1017, %v1053
    %1055 = vdwg.mxu0
    %v1056 = vmul.f32 %v1047, %v1047
    %v1057 = vmul.f32 %v1049, %v1049
    %v1058 = vmul.f32 %v1052, %v1052
    %v1059 = vmul.f32 %v1054, %v1054
    %v1060 = vmul.f32 %v1047, %v1056
    %v1061 = vmul.f32 %v1049, %v1057
    %v1062 = vmul.f32 %v1052, %v1058
    %v1063 = vmul.f32 %v1054, %v1059
    %v1064 = vmul.f32 %v1060, 0.044715
    %v1065 = vmul.f32 %v1061, 0.044715
    %v1066 = vmul.f32 %v1062, 0.044715
    %v1067 = vmul.f32 %v1063, 0.044715
    %v1068 = vadd.f32 %v1047, %v1064
    %v1069 = vadd.f32 %v1049, %v1065
    %v1070 = vadd.f32 %v1052, %v1066
    %v1071 = vadd.f32 %v1054, %v1067
    %v1072 = vmul.f32 %v1068, 0.7978846
    %v1073 = vmul.f32 %v1069, 0.7978846
    %v1074 = vmul.f32 %v1070, 0.7978846
    %v1075 = vmul.f32 %v1071, 0.7978846
    %v1076 = vtanh.pop %v1072
    %v1077 = vtanh.pop %v1073
    %v1078 = vtanh.pop %v1074
    %v1079 = vtanh.pop %v1075
    %v1080 = vadd.f32 %v1076, 1.0
    %v1081 = vadd.f32 %v1077, 1.0
    %v1082 = vadd.f32 %v1078, 1.0
    %v1083 = vadd.f32 %v1079, 1.0
    %v1084 = vmul.f32 %v1080, 0.5
    %v1085 = vmul.f32 %v1081, 0.5
    %v1086 = vmul.f32 %v1082, 0.5
    %v1087 = vmul.f32 %v1083, 0.5
    %v1088 = vmul.f32 %v1047, %v1084
    %v1089 = vmul.f32 %v1049, %v1085
    %v1090 = vmul.f32 %v1052, %v1086
    %v1091 = vmul.f32 %v1054, %v1087
    %v1092 = vpack.c.bf16 %v1089, %v1088
    %v1093 = vpack.c.bf16 %v1091, %v1090
    %v1095 = vperm.slane %v118, 0
    %v1113 = vunpack.c.l.b16 %v86
    %v1114 = vunpack.c.l.b16 %v87
    %v1115 = vunpack.c.l.b16 %v88
    %v1116 = vunpack.c.l.b16 %v89
    %v1117 = vunpack.c.l.b16 %v90
    %v1118 = vunpack.c.l.b16 %v91
    %v1119 = vunpack.c.l.b16 %v92
    %v1120 = vunpack.c.l.b16 %v93
    %v1121 = vunpack.c.l.b16 %v94
    %v1122 = vunpack.c.l.b16 %v95
    %v1123 = vunpack.c.l.b16 %v96
    %v1124 = vunpack.c.l.b16 %v97
    %v1125 = vunpack.c.l.b16 %v98
    %v1126 = vunpack.c.l.b16 %v99
    %v1127 = vunpack.c.l.b16 %v100
    %v1128 = vunpack.c.l.b16 %v101
    %v1129 = vpack.c.b16 %v1114, %v1113
    %v1130 = vpack.c.b16 %v1116, %v1115
    %v1131 = vpack.c.b16 %v1118, %v1117
    %v1132 = vpack.c.b16 %v1120, %v1119
    %v1133 = vpack.c.b16 %v1122, %v1121
    %v1134 = vpack.c.b16 %v1124, %v1123
    %v1135 = vpack.c.b16 %v1126, %v1125
    %v1136 = vpack.c.b16 %v1128, %v1127
    %1145 = vmatpush.bf16.msra.mxu0 %v1136
    %1146 = vmatpush.bf16.msra.mxu0 %v1135
    %1147 = vmatpush.bf16.msra.mxu0 %v1134
    %1148 = vmatpush.bf16.msra.mxu0 %v1133
    %1149 = vmatpush.bf16.msra.mxu0 %v1132
    %1150 = vmatpush.bf16.msra.mxu0 %v1131
    %1151 = vmatpush.bf16.msra.mxu0 %v1130
    %1152 = vmatpush.bf16.msra.mxu0 %v1129
    %1153 = vmatmul.bf16.gmra.mxu0 %v1092
    %v1154 = vpop.f32.mrf.mxu0
    %v1155 = vadd.f32 %v1095, %v1154
    %v1156 = vpop.f32.mrf.mxu0
    %v1157 = vadd.f32 %v1095, %v1156
    %1158 = vmatmul.bf16.gmra.mxu0 %v1093
    %v1159 = vpop.f32.mrf.mxu0
    %v1160 = vadd.f32 %v1095, %v1159
    %v1161 = vpop.f32.mrf.mxu0
    %v1162 = vadd.f32 %v1095, %v1161
    %1163 = vdwg.mxu0
    %v1164 = vadd.f32 %v1010, %v1155
    %v1165 = vadd.f32 %v1011, %v1157
    %v1166 = vadd.f32 %v1012, %v1160
    %v1167 = vadd.f32 %v1013, %v1162
    %v1168 = vsel %vm158, %v1164, 0.0
    %1169 = vadd.xlane.f32.xlu0 %v1168
    %v1170 = vpop.xlane.xlu0 %1169
    %v1171 = vsel %vm158, %v1165, 0.0
    %1172 = vadd.xlane.f32.xlu0 %v1171
    %v1173 = vpop.xlane.xlu0 %1172
    %v1174 = vsel %vm158, %v1166, 0.0
    %1175 = vadd.xlane.f32.xlu0 %v1174
    %v1176 = vpop.xlane.xlu0 %1175
    %v1177 = vsel %vm158, %v1167, 0.0
    %1178 = vadd.xlane.f32.xlu0 %v1177
    %v1179 = vpop.xlane.xlu0 %1178
    %v1180 = vmul.f32 %v1170, %v923
    %v1181 = vmul.f32 %v1173, %v923
    %v1182 = vmul.f32 %v1176, %v923
    %v1183 = vmul.f32 %v1179, %v923
    %v1184 = vsub.f32 %v1164, %v1180
    %v1185 = vsub.f32 %v1165, %v1181
    %v1186 = vsub.f32 %v1166, %v1182
    %v1187 = vsub.f32 %v1167, %v1183
    %v1188 = vmul.f32 %v1184, %v1184
    %v1189 = vmul.f32 %v1185, %v1185
    %v1190 = vmul.f32 %v1186, %v1186
    %v1191 = vmul.f32 %v1187, %v1187
    %v1192 = vsel %vm158, %v1188, 0.0
    %1193 = vadd.xlane.f32.xlu0 %v1192
    %v1194 = vpop.xlane.xlu0 %1193
    %v1195 = vsel %vm158, %v1189, 0.0
    %1196 = vadd.xlane.f32.xlu0 %v1195
    %v1197 = vpop.xlane.xlu0 %1196
    %v1198 = vsel %vm158, %v1190, 0.0
    %1199 = vadd.xlane.f32.xlu0 %v1198
    %v1200 = vpop.xlane.xlu0 %1199
    %v1201 = vsel %vm158, %v1191, 0.0
    %1202 = vadd.xlane.f32.xlu0 %v1201
    %v1203 = vpop.xlane.xlu0 %1202
    %v1204 = vmul.f32 %v1194, %v923
    %v1205 = vmul.f32 %v1197, %v923
    %v1206 = vmul.f32 %v1200, %v923
    %v1207 = vmul.f32 %v1203, %v923
    %v1208 = vadd.f32 %v1204, 1e-12
    %v1209 = vadd.f32 %v1205, 1e-12
    %v1210 = vadd.f32 %v1206, 1e-12
    %v1211 = vadd.f32 %v1207, 1e-12
    %v1212 = vrsqrt.pop %v1208
    %v1213 = vmul.f32 %v1212, %v1208
    %v1214 = vmul.f32 %v1213, %v1212
    %v1215 = vmul.f32 0.5, %v1214
    %v1216 = vsub.f32 1.5, %v1215
    %v1217 = vmul.f32 %v1212, %v1216
    %vm1218 = vweird.f32 %v1208
    %vm1219 = vweird.f32 %v1212
    %vm1220 = vmor %vm1218, %vm1219
    %v1221 = vsel %vm1220, %v1212, %v1217
    %v1222 = vrsqrt.pop %v1209
    %v1223 = vmul.f32 %v1222, %v1209
    %v1224 = vmul.f32 %v1223, %v1222
    %v1225 = vmul.f32 0.5, %v1224
    %v1226 = vsub.f32 1.5, %v1225
    %v1227 = vmul.f32 %v1222, %v1226
    %vm1228 = vweird.f32 %v1209
    %vm1229 = vweird.f32 %v1222
    %vm1230 = vmor %vm1228, %vm1229
    %v1231 = vsel %vm1230, %v1222, %v1227
    %v1232 = vrsqrt.pop %v1210
    %v1233 = vmul.f32 %v1232, %v1210
    %v1234 = vmul.f32 %v1233, %v1232
    %v1235 = vmul.f32 0.5, %v1234
    %v1236 = vsub.f32 1.5, %v1235
    %v1237 = vmul.f32 %v1232, %v1236
    %vm1238 = vweird.f32 %v1210
    %vm1239 = vweird.f32 %v1232
    %vm1240 = vmor %vm1238, %vm1239
    %v1241 = vsel %vm1240, %v1232, %v1237
    %v1242 = vrsqrt.pop %v1211
    %v1243 = vmul.f32 %v1242, %v1211
    %v1244 = vmul.f32 %v1243, %v1242
    %v1245 = vmul.f32 0.5, %v1244
    %v1246 = vsub.f32 1.5, %v1245
    %v1247 = vmul.f32 %v1242, %v1246
    %vm1248 = vweird.f32 %v1211
    %vm1249 = vweird.f32 %v1242
    %vm1250 = vmor %vm1248, %vm1249
    %v1251 = vsel %vm1250, %v1242, %v1247
    %v1252 = vmul.f32 %v1184, %v1221
    %v1253 = vmul.f32 %v1185, %v1231
    %v1254 = vmul.f32 %v1186, %v1241
    %v1255 = vmul.f32 %v1187, %v1251
    %v1257 = vperm.slane %v120, 0
    %v1259 = vmul.f32 %v1252, %v1257
    %v1260 = vmul.f32 %v1253, %v1257
    %v1261 = vmul.f32 %v1254, %v1257
    %v1262 = vmul.f32 %v1255, %v1257
    %v1264 = vperm.slane %v122, 0
    %v1266 = vadd.f32 %v1259, %v1264
    %v1267 = vadd.f32 %v1260, %v1264
    %v1268 = vadd.f32 %v1261, %v1264
    %v1269 = vadd.f32 %v1262, %v1264
    %v1270 = vpack.c.bf16 %v1267, %v1266
    %v1271 = vpack.c.bf16 %v1269, %v1268
    %v1273 = vperm.slane %v61, 0
    %v1279 = vunpack.c.l.b16 %v56
    %v1280 = vunpack.c.l.b16 %v57
    %v1281 = vunpack.c.l.b16 %v58
    %v1282 = vunpack.c.l.b16 %v59
    %v1283 = vpack.c.b16 %v1280, %v1279
    %v1284 = vpack.c.b16 %v1282, %v1281
    %v1288 = vsel %vm158, %v1270, 0
    %v1291 = vsel %vm158, %v1271, 0
    %1293 = vmatpush.bf16.msra.mxu0 0
    %1294 = vmatpush.bf16.msra.mxu0 0
    %1295 = vmatpush.bf16.msra.mxu0 0
    %1296 = vmatpush.bf16.msra.mxu0 0
    %1297 = vmatpush.bf16.msra.mxu0 0
    %1298 = vmatpush.bf16.msra.mxu0 0
    %1299 = vmatpush.bf16.msra.mxu0 %v1284
    %1300 = vmatpush.bf16.msra.mxu0 %v1283
    %1301 = vmatmul.bf16.gmra.mxu0 %v1288
    %v1302 = vpop.f32.mrf.mxu0
    %v1303 = vadd.f32 %v1273, %v1302
    %v1304 = vpop.f32.mrf.mxu0
    %v1305 = vadd.f32 %v1273, %v1304
    %1306 = vmatmul.bf16.gmra.mxu0 %v1291
    %v1307 = vpop.f32.mrf.mxu0
    %v1308 = vadd.f32 %v1273, %v1307
    %v1309 = vpop.f32.mrf.mxu0
    %v1310 = vadd.f32 %v1273, %v1309
    %1311 = vdwg.mxu0
    %v1312 = vmul.f32 %v1303, 0.35355338
    %v1313 = vmul.f32 %v1305, 0.35355338
    %v1314 = vmul.f32 %v1308, 0.35355338
    %v1315 = vmul.f32 %v1310, 0.35355338
    %v1316 = vpack.c.bf16 %v1312, %v1312
    %v1317 = vpack.c.bf16 %v1313, %v1313
    %v1318 = vpack.c.bf16 %v1314, %v1314
    %v1319 = vpack.c.bf16 %v1315, %v1315
    %v1320 = vpack.c.bf16 %v1303, %v1303
    %v1321 = vpack.c.bf16 %v1305, %v1305
    %v1322 = vpack.c.bf16 %v1308, %v1308
    %v1323 = vpack.c.bf16 %v1310, %v1310
    %v1326 = vunpack.c.l.b16 %v1316
    %v1327 = vunpack.c.l.b16 %v1317
    %v1328 = vpack.c.b16 %v1327, %v1326
    %v1331 = vunpack.c.l.b16 %v1320
    %v1332 = vunpack.c.l.b16 %v1321
    %v1333 = vpack.c.b16 %v1332, %v1331
    %1334 = vrot.lane.b32.xlu0 %v1333, 96
    %v1335 = vpop.permute.xlu0 %1334
    %v1337 = vsel %vm208, %v1328, 0
    %v1340 = vsel %vm208, %v1335, 0
    %1342 = vmatpush.bf16.xpose.msra.mxu0 0
    %1343 = vmatpush.bf16.xpose.msra.mxu0 0
    %1344 = vmatpush.bf16.xpose.msra.mxu0 0
    %1345 = vmatpush.bf16.xpose.msra.mxu0 0
    %1346 = vmatpush.bf16.xpose.msra.mxu0 0
    %1347 = vmatpush.bf16.xpose.msra.mxu0 0
    %1348 = vmatpush.bf16.xpose.msra.mxu0 0
    %1349 = vmatpush.bf16.xpose.msra.mxu0 %v1340
    %1350 = vmatmul.bf16.gmra.mxu0 %v1337
    %v1351 = vpop.f32.mrf.mxu0
    %v1352 = vadd.f32 %v137, %v1351
    %v1353 = vpop.f32.mrf.mxu0
    %v1354 = vadd.f32 %v138, %v1353
    %1355 = vdwg.mxu0
    %v1358 = vunpack.c.l.b16 %v1318
    %v1359 = vunpack.c.l.b16 %v1319
    %v1360 = vpack.c.b16 %v1359, %v1358
    %v1363 = vunpack.c.l.b16 %v1322
    %v1364 = vunpack.c.l.b16 %v1323
    %v1365 = vpack.c.b16 %v1364, %v1363
    %1366 = vrot.lane.b32.xlu0 %v1365, 96
    %v1367 = vpop.permute.xlu0 %1366
    %v1369 = vsel %vm208, %v1360, 0
    %v1372 = vsel %vm208, %v1367, 0
    %1374 = vmatpush.bf16.xpose.msra.mxu0 0
    %1375 = vmatpush.bf16.xpose.msra.mxu0 0
    %1376 = vmatpush.bf16.xpose.msra.mxu0 0
    %1377 = vmatpush.bf16.xpose.msra.mxu0 0
    %1378 = vmatpush.bf16.xpose.msra.mxu0 0
    %1379 = vmatpush.bf16.xpose.msra.mxu0 0
    %1380 = vmatpush.bf16.xpose.msra.mxu0 0
    %1381 = vmatpush.bf16.xpose.msra.mxu0 %v1372
    %1382 = vmatmul.bf16.gmra.mxu0 %v1369
    %v1383 = vpop.f32.mrf.mxu0
    %v1384 = vadd.f32 %v139, %v1383
    %v1385 = vpop.f32.mrf.mxu0
    %v1386 = vadd.f32 %v140, %v1385
    %1387 = vdwg.mxu0
    %v1388 = vsel %vm261, %v1352, -inf
    %1389 = vmax.xlane.f32.xlu0 %v1388
    %v1390 = vpop.xlane.xlu0 %1389
    %v1391 = vsel %vm261, %v1354, -inf
    %1392 = vmax.xlane.f32.xlu0 %v1391
    %v1393 = vpop.xlane.xlu0 %1392
    %v1394 = vsel %vm261, %v1384, -inf
    %1395 = vmax.xlane.f32.xlu0 %v1394
    %v1396 = vpop.xlane.xlu0 %1395
    %v1397 = vsel %vm261, %v1386, -inf
    %1398 = vmax.xlane.f32.xlu0 %v1397
    %v1399 = vpop.xlane.xlu0 %1398
    %v1400 = vsub.f32 %v1352, %v1390
    %v1401 = vsub.f32 %v1354, %v1393
    %v1402 = vsub.f32 %v1384, %v1396
    %v1403 = vsub.f32 %v1386, %v1399
    %v1404 = vmul.f32 %v1400, 1.442695
    %v1405 = vpow.pop %v1404
    %v1406 = vmul.f32 %v1401, 1.442695
    %v1407 = vpow.pop %v1406
    %v1408 = vmul.f32 %v1402, 1.442695
    %v1409 = vpow.pop %v1408
    %v1410 = vmul.f32 %v1403, 1.442695
    %v1411 = vpow.pop %v1410
    %v1412 = vsel %vm261, %v1405, 0.0
    %1413 = vadd.xlane.f32.xlu0 %v1412
    %v1414 = vpop.xlane.xlu0 %1413
    %v1415 = vsel %vm261, %v1407, 0.0
    %1416 = vadd.xlane.f32.xlu0 %v1415
    %v1417 = vpop.xlane.xlu0 %1416
    %v1418 = vsel %vm261, %v1409, 0.0
    %1419 = vadd.xlane.f32.xlu0 %v1418
    %v1420 = vpop.xlane.xlu0 %1419
    %v1421 = vsel %vm261, %v1411, 0.0
    %1422 = vadd.xlane.f32.xlu0 %v1421
    %v1423 = vpop.xlane.xlu0 %1422
    %v1424 = vrcp.pop %v1414
    %v1425 = vrcp.pop %v1417
    %v1426 = vrcp.pop %v1420
    %v1427 = vrcp.pop %v1423
    %v1428 = vmul.f32 %v1405, %v1424
    %v1429 = vmul.f32 %v1407, %v1425
    %v1430 = vmul.f32 %v1409, %v1426
    %v1431 = vmul.f32 %v1411, %v1427
    %v1432 = vpack.c.bf16 %v1428, %v1428
    %v1433 = vpack.c.bf16 %v1429, %v1429
    %v1434 = vpack.c.bf16 %v1430, %v1430
    %v1435 = vpack.c.bf16 %v1431, %v1431
    %v1438 = vunpack.c.l.b16 %v1432
    %v1439 = vunpack.c.l.b16 %v1433
    %v1440 = vpack.c.b16 %v1439, %v1438
    %1441 = vrot.lane.b32.xlu0 %v1333, 64
    %v1442 = vpop.permute.xlu0 %1441
    %v1445 = vsel %vm261, %v1440, 0
    %1447 = vmatpush.bf16.msra.mxu0 0
    %1448 = vmatpush.bf16.msra.mxu0 0
    %1449 = vmatpush.bf16.msra.mxu0 0
    %1450 = vmatpush.bf16.msra.mxu0 0
    %1451 = vmatpush.bf16.msra.mxu0 0
    %1452 = vmatpush.bf16.msra.mxu0 0
    %1453 = vmatpush.bf16.msra.mxu0 0
    %1454 = vmatpush.bf16.msra.mxu0 %v1442
    %1455 = vmatmul.bf16.gmra.mxu0 %v1445
    %v1456 = vpop.f32.mrf.mxu0
    %v1457 = vadd.f32 0.0, %v1456
    %v1458 = vpop.f32.mrf.mxu0
    %v1459 = vadd.f32 0.0, %v1458
    %1460 = vdwg.mxu0
    %v1463 = vunpack.c.l.b16 %v1434
    %v1464 = vunpack.c.l.b16 %v1435
    %v1465 = vpack.c.b16 %v1464, %v1463
    %1466 = vrot.lane.b32.xlu0 %v1365, 64
    %v1467 = vpop.permute.xlu0 %1466
    %v1470 = vsel %vm261, %v1465, 0
    %1472 = vmatpush.bf16.msra.mxu0 0
    %1473 = vmatpush.bf16.msra.mxu0 0
    %1474 = vmatpush.bf16.msra.mxu0 0
    %1475 = vmatpush.bf16.msra.mxu0 0
    %1476 = vmatpush.bf16.msra.mxu0 0
    %1477 = vmatpush.bf16.msra.mxu0 0
    %1478 = vmatpush.bf16.msra.mxu0 0
    %1479 = vmatpush.bf16.msra.mxu0 %v1467
    %1480 = vmatmul.bf16.gmra.mxu0 %v1470
    %v1481 = vpop.f32.mrf.mxu0
    %v1482 = vadd.f32 0.0, %v1481
    %v1483 = vpop.f32.mrf.mxu0
    %v1484 = vadd.f32 0.0, %v1483
    %1485 = vdwg.mxu0
    %1486 = vrot.lane.b32.xlu0 %v1328, 120
    %v1487 = vpop.permute.xlu0 %1486
    %1488 = vrot.lane.b32.xlu0 %v1333, 88
    %v1489 = vpop.permute.xlu0 %1488
    %v1491 = vsel %vm208, %v1487, 0
    %v1494 = vsel %vm208, %v1489, 0
    %1496 = vmatpush.bf16.xpose.msra.mxu0 0
    %1497 = vmatpush.bf16.xpose.msra.mxu0 0
    %1498 = vmatpush.bf16.xpose.msra.mxu0 0
    %1499 = vmatpush.bf16.xpose.msra.mxu0 0
    %1500 = vmatpush.bf16.xpose.msra.mxu0 0
    %1501 = vmatpush.bf16.xpose.msra.mxu0 0
    %1502 = vmatpush.bf16.xpose.msra.mxu0 0
    %1503 = vmatpush.bf16.xpose.msra.mxu0 %v1494
    %1504 = vmatmul.bf16.gmra.mxu0 %v1491
    %v1505 = vpop.f32.mrf.mxu0
    %v1506 = vadd.f32 %v137, %v1505
    %v1507 = vpop.f32.mrf.mxu0
    %v1508 = vadd.f32 %v138, %v1507
    %1509 = vdwg.mxu0
    %1510 = vrot.lane.b32.xlu0 %v1360, 120
    %v1511 = vpop.permute.xlu0 %1510
    %1512 = vrot.lane.b32.xlu0 %v1365, 88
    %v1513 = vpop.permute.xlu0 %1512
    %v1515 = vsel %vm208, %v1511, 0
    %v1518 = vsel %vm208, %v1513, 0
    %1520 = vmatpush.bf16.xpose.msra.mxu0 0
    %1521 = vmatpush.bf16.xpose.msra.mxu0 0
    %1522 = vmatpush.bf16.xpose.msra.mxu0 0
    %1523 = vmatpush.bf16.xpose.msra.mxu0 0
    %1524 = vmatpush.bf16.xpose.msra.mxu0 0
    %1525 = vmatpush.bf16.xpose.msra.mxu0 0
    %1526 = vmatpush.bf16.xpose.msra.mxu0 0
    %1527 = vmatpush.bf16.xpose.msra.mxu0 %v1518
    %1528 = vmatmul.bf16.gmra.mxu0 %v1515
    %v1529 = vpop.f32.mrf.mxu0
    %v1530 = vadd.f32 %v139, %v1529
    %v1531 = vpop.f32.mrf.mxu0
    %v1532 = vadd.f32 %v140, %v1531
    %1533 = vdwg.mxu0
    %v1534 = vsel %vm261, %v1506, -inf
    %1535 = vmax.xlane.f32.xlu0 %v1534
    %v1536 = vpop.xlane.xlu0 %1535
    %v1537 = vsel %vm261, %v1508, -inf
    %1538 = vmax.xlane.f32.xlu0 %v1537
    %v1539 = vpop.xlane.xlu0 %1538
    %v1540 = vsel %vm261, %v1530, -inf
    %1541 = vmax.xlane.f32.xlu0 %v1540
    %v1542 = vpop.xlane.xlu0 %1541
    %v1543 = vsel %vm261, %v1532, -inf
    %1544 = vmax.xlane.f32.xlu0 %v1543
    %v1545 = vpop.xlane.xlu0 %1544
    %v1546 = vsub.f32 %v1506, %v1536
    %v1547 = vsub.f32 %v1508, %v1539
    %v1548 = vsub.f32 %v1530, %v1542
    %v1549 = vsub.f32 %v1532, %v1545
    %v1550 = vmul.f32 %v1546, 1.442695
    %v1551 = vpow.pop %v1550
    %v1552 = vmul.f32 %v1547, 1.442695
    %v1553 = vpow.pop %v1552
    %v1554 = vmul.f32 %v1548, 1.442695
    %v1555 = vpow.pop %v1554
    %v1556 = vmul.f32 %v1549, 1.442695
    %v1557 = vpow.pop %v1556
    %v1558 = vsel %vm261, %v1551, 0.0
    %1559 = vadd.xlane.f32.xlu0 %v1558
    %v1560 = vpop.xlane.xlu0 %1559
    %v1561 = vsel %vm261, %v1553, 0.0
    %1562 = vadd.xlane.f32.xlu0 %v1561
    %v1563 = vpop.xlane.xlu0 %1562
    %v1564 = vsel %vm261, %v1555, 0.0
    %1565 = vadd.xlane.f32.xlu0 %v1564
    %v1566 = vpop.xlane.xlu0 %1565
    %v1567 = vsel %vm261, %v1557, 0.0
    %1568 = vadd.xlane.f32.xlu0 %v1567
    %v1569 = vpop.xlane.xlu0 %1568
    %v1570 = vrcp.pop %v1560
    %v1571 = vrcp.pop %v1563
    %v1572 = vrcp.pop %v1566
    %v1573 = vrcp.pop %v1569
    %v1574 = vmul.f32 %v1551, %v1570
    %v1575 = vmul.f32 %v1553, %v1571
    %v1576 = vmul.f32 %v1555, %v1572
    %v1577 = vmul.f32 %v1557, %v1573
    %v1578 = vpack.c.bf16 %v1574, %v1574
    %v1579 = vpack.c.bf16 %v1575, %v1575
    %v1580 = vpack.c.bf16 %v1576, %v1576
    %v1581 = vpack.c.bf16 %v1577, %v1577
    %v1584 = vunpack.c.l.b16 %v1578
    %v1585 = vunpack.c.l.b16 %v1579
    %v1586 = vpack.c.b16 %v1585, %v1584
    %1587 = vrot.lane.b32.xlu0 %v1333, 56
    %v1588 = vpop.permute.xlu0 %1587
    %v1591 = vsel %vm261, %v1586, 0
    %1593 = vmatpush.bf16.msra.mxu0 0
    %1594 = vmatpush.bf16.msra.mxu0 0
    %1595 = vmatpush.bf16.msra.mxu0 0
    %1596 = vmatpush.bf16.msra.mxu0 0
    %1597 = vmatpush.bf16.msra.mxu0 0
    %1598 = vmatpush.bf16.msra.mxu0 0
    %1599 = vmatpush.bf16.msra.mxu0 0
    %1600 = vmatpush.bf16.msra.mxu0 %v1588
    %1601 = vmatmul.bf16.gmra.mxu0 %v1591
    %v1602 = vpop.f32.mrf.mxu0
    %v1603 = vadd.f32 0.0, %v1602
    %v1604 = vpop.f32.mrf.mxu0
    %v1605 = vadd.f32 0.0, %v1604
    %1606 = vdwg.mxu0
    %v1609 = vunpack.c.l.b16 %v1580
    %v1610 = vunpack.c.l.b16 %v1581
    %v1611 = vpack.c.b16 %v1610, %v1609
    %1612 = vrot.lane.b32.xlu0 %v1365, 56
    %v1613 = vpop.permute.xlu0 %1612
    %v1616 = vsel %vm261, %v1611, 0
    %1618 = vmatpush.bf16.msra.mxu0 0
    %1619 = vmatpush.bf16.msra.mxu0 0
    %1620 = vmatpush.bf16.msra.mxu0 0
    %1621 = vmatpush.bf16.msra.mxu0 0
    %1622 = vmatpush.bf16.msra.mxu0 0
    %1623 = vmatpush.bf16.msra.mxu0 0
    %1624 = vmatpush.bf16.msra.mxu0 0
    %1625 = vmatpush.bf16.msra.mxu0 %v1613
    %1626 = vmatmul.bf16.gmra.mxu0 %v1616
    %v1627 = vpop.f32.mrf.mxu0
    %v1628 = vadd.f32 0.0, %v1627
    %v1629 = vpop.f32.mrf.mxu0
    %v1630 = vadd.f32 0.0, %v1629
    %1631 = vdwg.mxu0
    %1632 = vrot.lane.b32.xlu0 %v1328, 112
    %v1633 = vpop.permute.xlu0 %1632
    %1634 = vrot.lane.b32.xlu0 %v1333, 80
    %v1635 = vpop.permute.xlu0 %1634
    %v1637 = vsel %vm208, %v1633, 0
    %v1640 = vsel %vm208, %v1635, 0
    %1642 = vmatpush.bf16.xpose.msra.mxu0 0
    %1643 = vmatpush.bf16.xpose.msra.mxu0 0
    %1644 = vmatpush.bf16.xpose.msra.mxu0 0
    %1645 = vmatpush.bf16.xpose.msra.mxu0 0
    %1646 = vmatpush.bf16.xpose.msra.mxu0 0
    %1647 = vmatpush.bf16.xpose.msra.mxu0 0
    %1648 = vmatpush.bf16.xpose.msra.mxu0 0
    %1649 = vmatpush.bf16.xpose.msra.mxu0 %v1640
    %1650 = vmatmul.bf16.gmra.mxu0 %v1637
    %v1651 = vpop.f32.mrf.mxu0
    %v1652 = vadd.f32 %v137, %v1651
    %v1653 = vpop.f32.mrf.mxu0
    %v1654 = vadd.f32 %v138, %v1653
    %1655 = vdwg.mxu0
    %1656 = vrot.lane.b32.xlu0 %v1360, 112
    %v1657 = vpop.permute.xlu0 %1656
    %1658 = vrot.lane.b32.xlu0 %v1365, 80
    %v1659 = vpop.permute.xlu0 %1658
    %v1661 = vsel %vm208, %v1657, 0
    %v1664 = vsel %vm208, %v1659, 0
    %1666 = vmatpush.bf16.xpose.msra.mxu0 0
    %1667 = vmatpush.bf16.xpose.msra.mxu0 0
    %1668 = vmatpush.bf16.xpose.msra.mxu0 0
    %1669 = vmatpush.bf16.xpose.msra.mxu0 0
    %1670 = vmatpush.bf16.xpose.msra.mxu0 0
    %1671 = vmatpush.bf16.xpose.msra.mxu0 0
    %1672 = vmatpush.bf16.xpose.msra.mxu0 0
    %1673 = vmatpush.bf16.xpose.msra.mxu0 %v1664
    %1674 = vmatmul.bf16.gmra.mxu0 %v1661
    %v1675 = vpop.f32.mrf.mxu0
    %v1676 = vadd.f32 %v139, %v1675
    %v1677 = vpop.f32.mrf.mxu0
    %v1678 = vadd.f32 %v140, %v1677
    %1679 = vdwg.mxu0
    %v1680 = vsel %vm261, %v1652, -inf
    %1681 = vmax.xlane.f32.xlu0 %v1680
    %v1682 = vpop.xlane.xlu0 %1681
    %v1683 = vsel %vm261, %v1654, -inf
    %1684 = vmax.xlane.f32.xlu0 %v1683
    %v1685 = vpop.xlane.xlu0 %1684
    %v1686 = vsel %vm261, %v1676, -inf
    %1687 = vmax.xlane.f32.xlu0 %v1686
    %v1688 = vpop.xlane.xlu0 %1687
    %v1689 = vsel %vm261, %v1678, -inf
    %1690 = vmax.xlane.f32.xlu0 %v1689
    %v1691 = vpop.xlane.xlu0 %1690
    %v1692 = vsub.f32 %v1652, %v1682
    %v1693 = vsub.f32 %v1654, %v1685
    %v1694 = vsub.f32 %v1676, %v1688
    %v1695 = vsub.f32 %v1678, %v1691
    %v1696 = vmul.f32 %v1692, 1.442695
    %v1697 = vpow.pop %v1696
    %v1698 = vmul.f32 %v1693, 1.442695
    %v1699 = vpow.pop %v1698
    %v1700 = vmul.f32 %v1694, 1.442695
    %v1701 = vpow.pop %v1700
    %v1702 = vmul.f32 %v1695, 1.442695
    %v1703 = vpow.pop %v1702
    %v1704 = vsel %vm261, %v1697, 0.0
    %1705 = vadd.xlane.f32.xlu0 %v1704
    %v1706 = vpop.xlane.xlu0 %1705
    %v1707 = vsel %vm261, %v1699, 0.0
    %1708 = vadd.xlane.f32.xlu0 %v1707
    %v1709 = vpop.xlane.xlu0 %1708
    %v1710 = vsel %vm261, %v1701, 0.0
    %1711 = vadd.xlane.f32.xlu0 %v1710
    %v1712 = vpop.xlane.xlu0 %1711
    %v1713 = vsel %vm261, %v1703, 0.0
    %1714 = vadd.xlane.f32.xlu0 %v1713
    %v1715 = vpop.xlane.xlu0 %1714
    %v1716 = vrcp.pop %v1706
    %v1717 = vrcp.pop %v1709
    %v1718 = vrcp.pop %v1712
    %v1719 = vrcp.pop %v1715
    %v1720 = vmul.f32 %v1697, %v1716
    %v1721 = vmul.f32 %v1699, %v1717
    %v1722 = vmul.f32 %v1701, %v1718
    %v1723 = vmul.f32 %v1703, %v1719
    %v1724 = vpack.c.bf16 %v1720, %v1720
    %v1725 = vpack.c.bf16 %v1721, %v1721
    %v1726 = vpack.c.bf16 %v1722, %v1722
    %v1727 = vpack.c.bf16 %v1723, %v1723
    %v1730 = vunpack.c.l.b16 %v1724
    %v1731 = vunpack.c.l.b16 %v1725
    %v1732 = vpack.c.b16 %v1731, %v1730
    %1733 = vrot.lane.b32.xlu0 %v1333, 48
    %v1734 = vpop.permute.xlu0 %1733
    %v1737 = vsel %vm261, %v1732, 0
    %1739 = vmatpush.bf16.msra.mxu0 0
    %1740 = vmatpush.bf16.msra.mxu0 0
    %1741 = vmatpush.bf16.msra.mxu0 0
    %1742 = vmatpush.bf16.msra.mxu0 0
    %1743 = vmatpush.bf16.msra.mxu0 0
    %1744 = vmatpush.bf16.msra.mxu0 0
    %1745 = vmatpush.bf16.msra.mxu0 0
    %1746 = vmatpush.bf16.msra.mxu0 %v1734
    %1747 = vmatmul.bf16.gmra.mxu0 %v1737
    %v1748 = vpop.f32.mrf.mxu0
    %v1749 = vadd.f32 0.0, %v1748
    %v1750 = vpop.f32.mrf.mxu0
    %v1751 = vadd.f32 0.0, %v1750
    %1752 = vdwg.mxu0
    %v1755 = vunpack.c.l.b16 %v1726
    %v1756 = vunpack.c.l.b16 %v1727
    %v1757 = vpack.c.b16 %v1756, %v1755
    %1758 = vrot.lane.b32.xlu0 %v1365, 48
    %v1759 = vpop.permute.xlu0 %1758
    %v1762 = vsel %vm261, %v1757, 0
    %1764 = vmatpush.bf16.msra.mxu0 0
    %1765 = vmatpush.bf16.msra.mxu0 0
    %1766 = vmatpush.bf16.msra.mxu0 0
    %1767 = vmatpush.bf16.msra.mxu0 0
    %1768 = vmatpush.bf16.msra.mxu0 0
    %1769 = vmatpush.bf16.msra.mxu0 0
    %1770 = vmatpush.bf16.msra.mxu0 0
    %1771 = vmatpush.bf16.msra.mxu0 %v1759
    %1772 = vmatmul.bf16.gmra.mxu0 %v1762
    %v1773 = vpop.f32.mrf.mxu0
    %v1774 = vadd.f32 0.0, %v1773
    %v1775 = vpop.f32.mrf.mxu0
    %v1776 = vadd.f32 0.0, %v1775
    %1777 = vdwg.mxu0
    %1778 = vrot.lane.b32.xlu0 %v1328, 104
    %v1779 = vpop.permute.xlu0 %1778
    %1780 = vrot.lane.b32.xlu0 %v1333, 72
    %v1781 = vpop.permute.xlu0 %1780
    %v1783 = vsel %vm208, %v1779, 0
    %v1786 = vsel %vm208, %v1781, 0
    %1788 = vmatpush.bf16.xpose.msra.mxu0 0
    %1789 = vmatpush.bf16.xpose.msra.mxu0 0
    %1790 = vmatpush.bf16.xpose.msra.mxu0 0
    %1791 = vmatpush.bf16.xpose.msra.mxu0 0
    %1792 = vmatpush.bf16.xpose.msra.mxu0 0
    %1793 = vmatpush.bf16.xpose.msra.mxu0 0
    %1794 = vmatpush.bf16.xpose.msra.mxu0 0
    %1795 = vmatpush.bf16.xpose.msra.mxu0 %v1786
    %1796 = vmatmul.bf16.gmra.mxu0 %v1783
    %v1797 = vpop.f32.mrf.mxu0
    %v1798 = vadd.f32 %v137, %v1797
    %v1799 = vpop.f32.mrf.mxu0
    %v1800 = vadd.f32 %v138, %v1799
    %1801 = vdwg.mxu0
    %1802 = vrot.lane.b32.xlu0 %v1360, 104
    %v1803 = vpop.permute.xlu0 %1802
    %1804 = vrot.lane.b32.xlu0 %v1365, 72
    %v1805 = vpop.permute.xlu0 %1804
    %v1807 = vsel %vm208, %v1803, 0
    %v1810 = vsel %vm208, %v1805, 0
    %1812 = vmatpush.bf16.xpose.msra.mxu0 0
    %1813 = vmatpush.bf16.xpose.msra.mxu0 0
    %1814 = vmatpush.bf16.xpose.msra.mxu0 0
    %1815 = vmatpush.bf16.xpose.msra.mxu0 0
    %1816 = vmatpush.bf16.xpose.msra.mxu0 0
    %1817 = vmatpush.bf16.xpose.msra.mxu0 0
    %1818 = vmatpush.bf16.xpose.msra.mxu0 0
    %1819 = vmatpush.bf16.xpose.msra.mxu0 %v1810
    %1820 = vmatmul.bf16.gmra.mxu0 %v1807
    %v1821 = vpop.f32.mrf.mxu0
    %v1822 = vadd.f32 %v139, %v1821
    %v1823 = vpop.f32.mrf.mxu0
    %v1824 = vadd.f32 %v140, %v1823
    %1825 = vdwg.mxu0
    %v1826 = vsel %vm261, %v1798, -inf
    %1827 = vmax.xlane.f32.xlu0 %v1826
    %v1828 = vpop.xlane.xlu0 %1827
    %v1829 = vsel %vm261, %v1800, -inf
    %1830 = vmax.xlane.f32.xlu0 %v1829
    %v1831 = vpop.xlane.xlu0 %1830
    %v1832 = vsel %vm261, %v1822, -inf
    %1833 = vmax.xlane.f32.xlu0 %v1832
    %v1834 = vpop.xlane.xlu0 %1833
    %v1835 = vsel %vm261, %v1824, -inf
    %1836 = vmax.xlane.f32.xlu0 %v1835
    %v1837 = vpop.xlane.xlu0 %1836
    %v1838 = vsub.f32 %v1798, %v1828
    %v1839 = vsub.f32 %v1800, %v1831
    %v1840 = vsub.f32 %v1822, %v1834
    %v1841 = vsub.f32 %v1824, %v1837
    %v1842 = vmul.f32 %v1838, 1.442695
    %v1843 = vpow.pop %v1842
    %v1844 = vmul.f32 %v1839, 1.442695
    %v1845 = vpow.pop %v1844
    %v1846 = vmul.f32 %v1840, 1.442695
    %v1847 = vpow.pop %v1846
    %v1848 = vmul.f32 %v1841, 1.442695
    %v1849 = vpow.pop %v1848
    %v1850 = vsel %vm261, %v1843, 0.0
    %1851 = vadd.xlane.f32.xlu0 %v1850
    %v1852 = vpop.xlane.xlu0 %1851
    %v1853 = vsel %vm261, %v1845, 0.0
    %1854 = vadd.xlane.f32.xlu0 %v1853
    %v1855 = vpop.xlane.xlu0 %1854
    %v1856 = vsel %vm261, %v1847, 0.0
    %1857 = vadd.xlane.f32.xlu0 %v1856
    %v1858 = vpop.xlane.xlu0 %1857
    %v1859 = vsel %vm261, %v1849, 0.0
    %1860 = vadd.xlane.f32.xlu0 %v1859
    %v1861 = vpop.xlane.xlu0 %1860
    %v1862 = vrcp.pop %v1852
    %v1863 = vrcp.pop %v1855
    %v1864 = vrcp.pop %v1858
    %v1865 = vrcp.pop %v1861
    %v1866 = vmul.f32 %v1843, %v1862
    %v1867 = vmul.f32 %v1845, %v1863
    %v1868 = vmul.f32 %v1847, %v1864
    %v1869 = vmul.f32 %v1849, %v1865
    %v1870 = vpack.c.bf16 %v1866, %v1866
    %v1871 = vpack.c.bf16 %v1867, %v1867
    %v1872 = vpack.c.bf16 %v1868, %v1868
    %v1873 = vpack.c.bf16 %v1869, %v1869
    %v1876 = vunpack.c.l.b16 %v1870
    %v1877 = vunpack.c.l.b16 %v1871
    %v1878 = vpack.c.b16 %v1877, %v1876
    %1879 = vrot.lane.b32.xlu0 %v1333, 40
    %v1880 = vpop.permute.xlu0 %1879
    %v1883 = vsel %vm261, %v1878, 0
    %1885 = vmatpush.bf16.msra.mxu0 0
    %1886 = vmatpush.bf16.msra.mxu0 0
    %1887 = vmatpush.bf16.msra.mxu0 0
    %1888 = vmatpush.bf16.msra.mxu0 0
    %1889 = vmatpush.bf16.msra.mxu0 0
    %1890 = vmatpush.bf16.msra.mxu0 0
    %1891 = vmatpush.bf16.msra.mxu0 0
    %1892 = vmatpush.bf16.msra.mxu0 %v1880
    %1893 = vmatmul.bf16.gmra.mxu0 %v1883
    %v1894 = vpop.f32.mrf.mxu0
    %v1895 = vadd.f32 0.0, %v1894
    %v1896 = vpop.f32.mrf.mxu0
    %v1897 = vadd.f32 0.0, %v1896
    %1898 = vdwg.mxu0
    %v1901 = vunpack.c.l.b16 %v1872
    %v1902 = vunpack.c.l.b16 %v1873
    %v1903 = vpack.c.b16 %v1902, %v1901
    %1904 = vrot.lane.b32.xlu0 %v1365, 40
    %v1905 = vpop.permute.xlu0 %1904
    %v1908 = vsel %vm261, %v1903, 0
    %1910 = vmatpush.bf16.msra.mxu0 0
    %1911 = vmatpush.bf16.msra.mxu0 0
    %1912 = vmatpush.bf16.msra.mxu0 0
    %1913 = vmatpush.bf16.msra.mxu0 0
    %1914 = vmatpush.bf16.msra.mxu0 0
    %1915 = vmatpush.bf16.msra.mxu0 0
    %1916 = vmatpush.bf16.msra.mxu0 0
    %1917 = vmatpush.bf16.msra.mxu0 %v1905
    %1918 = vmatmul.bf16.gmra.mxu0 %v1908
    %v1919 = vpop.f32.mrf.mxu0
    %v1920 = vadd.f32 0.0, %v1919
    %v1921 = vpop.f32.mrf.mxu0
    %v1922 = vadd.f32 0.0, %v1921
    %1923 = vdwg.mxu0
    %1928 = vrot.lane.b32.xlu0 %v1603, 8
    %v1929 = vpop.permute.xlu0 %1928
    %1930 = vrot.lane.b32.xlu0 %v1605, 8
    %v1931 = vpop.permute.xlu0 %1930
    %1932 = vrot.lane.b32.xlu0 %v1628, 8
    %v1933 = vpop.permute.xlu0 %1932
    %1934 = vrot.lane.b32.xlu0 %v1630, 8
    %v1935 = vpop.permute.xlu0 %1934
    %1944 = vrot.lane.b32.xlu0 %v1749, 16
    %v1945 = vpop.permute.xlu0 %1944
    %1946 = vrot.lane.b32.xlu0 %v1751, 16
    %v1947 = vpop.permute.xlu0 %1946
    %1948 = vrot.lane.b32.xlu0 %v1774, 16
    %v1949 = vpop.permute.xlu0 %1948
    %1950 = vrot.lane.b32.xlu0 %v1776, 16
    %v1951 = vpop.permute.xlu0 %1950
    %1960 = vrot.lane.b32.xlu0 %v1895, 24
    %v1961 = vpop.permute.xlu0 %1960
    %1962 = vrot.lane.b32.xlu0 %v1897, 24
    %v1963 = vpop.permute.xlu0 %1962
    %1964 = vrot.lane.b32.xlu0 %v1920, 24
    %v1965 = vpop.permute.xlu0 %1964
    %1966 = vrot.lane.b32.xlu0 %v1922, 24
    %v1967 = vpop.permute.xlu0 %1966
    %v1972 = vsel %vm208, %v1457, %v1929
    %v1973 = vsel %vm208, %v1459, %v1931
    %v1974 = vsel %vm208, %v1482, %v1933
    %v1975 = vsel %vm208, %v1484, %v1935
    %v1976 = vsel %vm261, %v1972, %v1945
    %v1977 = vsel %vm261, %v1973, %v1947
    %v1978 = vsel %vm261, %v1974, %v1949
    %v1979 = vsel %vm261, %v1975, %v1951
    %v1980 = vsel %vm854, %v1976, %v1961
    %v1981 = vsel %vm854, %v1977, %v1963
    %v1982 = vsel %vm854, %v1978, %v1965
    %v1983 = vsel %vm854, %v1979, %v1967
    %v1984 = vpack.c.bf16 %v1981, %v1980
    %v1985 = vpack.c.bf16 %v1983, %v1982
    %v1987 = vperm.slane %v71, 0
    %v1993 = vunpack.c.l.b16 %v66
    %v1994 = vunpack.c.l.b16 %v67
    %v1995 = vunpack.c.l.b16 %v68
    %v1996 = vunpack.c.l.b16 %v69
    %v1997 = vpack.c.b16 %v1994, %v1993
    %v1998 = vpack.c.b16 %v1996, %v1995
    %v2002 = vsel %vm158, %v1984, 0
    %v2005 = vsel %vm158, %v1985, 0
    %2007 = vmatpush.bf16.msra.mxu0 0
    %2008 = vmatpush.bf16.msra.mxu0 0
    %2009 = vmatpush.bf16.msra.mxu0 0
    %2010 = vmatpush.bf16.msra.mxu0 0
    %2011 = vmatpush.bf16.msra.mxu0 0
    %2012 = vmatpush.bf16.msra.mxu0 0
    %2013 = vmatpush.bf16.msra.mxu0 %v1998
    %2014 = vmatpush.bf16.msra.mxu0 %v1997
    %2015 = vmatmul.bf16.gmra.mxu0 %v2002
    %v2016 = vpop.f32.mrf.mxu0
    %v2017 = vadd.f32 %v1987, %v2016
    %v2018 = vpop.f32.mrf.mxu0
    %v2019 = vadd.f32 %v1987, %v2018
    %2020 = vmatmul.bf16.gmra.mxu0 %v2005
    %v2021 = vpop.f32.mrf.mxu0
    %v2022 = vadd.f32 %v1987, %v2021
    %v2023 = vpop.f32.mrf.mxu0
    %v2024 = vadd.f32 %v1987, %v2023
    %2025 = vdwg.mxu0
    %v2026 = vadd.f32 %v1266, %v2017
    %v2027 = vadd.f32 %v1267, %v2019
    %v2028 = vadd.f32 %v1268, %v2022
    %v2029 = vadd.f32 %v1269, %v2024
    %v2030 = vsel %vm158, %v2026, 0.0
    %2031 = vadd.xlane.f32.xlu0 %v2030
    %v2032 = vpop.xlane.xlu0 %2031
    %v2033 = vsel %vm158, %v2027, 0.0
    %2034 = vadd.xlane.f32.xlu0 %v2033
    %v2035 = vpop.xlane.xlu0 %2034
    %v2036 = vsel %vm158, %v2028, 0.0
    %2037 = vadd.xlane.f32.xlu0 %v2036
    %v2038 = vpop.xlane.xlu0 %2037
    %v2039 = vsel %vm158, %v2029, 0.0
    %2040 = vadd.xlane.f32.xlu0 %v2039
    %v2041 = vpop.xlane.xlu0 %2040
    %v2042 = vmul.f32 %v2032, %v923
    %v2043 = vmul.f32 %v2035, %v923
    %v2044 = vmul.f32 %v2038, %v923
    %v2045 = vmul.f32 %v2041, %v923
    %v2046 = vsub.f32 %v2026, %v2042
    %v2047 = vsub.f32 %v2027, %v2043
    %v2048 = vsub.f32 %v2028, %v2044
    %v2049 = vsub.f32 %v2029, %v2045
    %v2050 = vmul.f32 %v2046, %v2046
    %v2051 = vmul.f32 %v2047, %v2047
    %v2052 = vmul.f32 %v2048, %v2048
    %v2053 = vmul.f32 %v2049, %v2049
    %v2054 = vsel %vm158, %v2050, 0.0
    %2055 = vadd.xlane.f32.xlu0 %v2054
    %v2056 = vpop.xlane.xlu0 %2055
    %v2057 = vsel %vm158, %v2051, 0.0
    %2058 = vadd.xlane.f32.xlu0 %v2057
    %v2059 = vpop.xlane.xlu0 %2058
    %v2060 = vsel %vm158, %v2052, 0.0
    %2061 = vadd.xlane.f32.xlu0 %v2060
    %v2062 = vpop.xlane.xlu0 %2061
    %v2063 = vsel %vm158, %v2053, 0.0
    %2064 = vadd.xlane.f32.xlu0 %v2063
    %v2065 = vpop.xlane.xlu0 %2064
    %v2066 = vmul.f32 %v2056, %v923
    %v2067 = vmul.f32 %v2059, %v923
    %v2068 = vmul.f32 %v2062, %v923
    %v2069 = vmul.f32 %v2065, %v923
    %v2070 = vadd.f32 %v2066, 1e-12
    %v2071 = vadd.f32 %v2067, 1e-12
    %v2072 = vadd.f32 %v2068, 1e-12
    %v2073 = vadd.f32 %v2069, 1e-12
    %v2074 = vrsqrt.pop %v2070
    %v2075 = vmul.f32 %v2074, %v2070
    %v2076 = vmul.f32 %v2075, %v2074
    %v2077 = vmul.f32 0.5, %v2076
    %v2078 = vsub.f32 1.5, %v2077
    %v2079 = vmul.f32 %v2074, %v2078
    %vm2080 = vweird.f32 %v2070
    %vm2081 = vweird.f32 %v2074
    %vm2082 = vmor %vm2080, %vm2081
    %v2083 = vsel %vm2082, %v2074, %v2079
    %v2084 = vrsqrt.pop %v2071
    %v2085 = vmul.f32 %v2084, %v2071
    %v2086 = vmul.f32 %v2085, %v2084
    %v2087 = vmul.f32 0.5, %v2086
    %v2088 = vsub.f32 1.5, %v2087
    %v2089 = vmul.f32 %v2084, %v2088
    %vm2090 = vweird.f32 %v2071
    %vm2091 = vweird.f32 %v2084
    %vm2092 = vmor %vm2090, %vm2091
    %v2093 = vsel %vm2092, %v2084, %v2089
    %v2094 = vrsqrt.pop %v2072
    %v2095 = vmul.f32 %v2094, %v2072
    %v2096 = vmul.f32 %v2095, %v2094
    %v2097 = vmul.f32 0.5, %v2096
    %v2098 = vsub.f32 1.5, %v2097
    %v2099 = vmul.f32 %v2094, %v2098
    %vm2100 = vweird.f32 %v2072
    %vm2101 = vweird.f32 %v2094
    %vm2102 = vmor %vm2100, %vm2101
    %v2103 = vsel %vm2102, %v2094, %v2099
    %v2104 = vrsqrt.pop %v2073
    %v2105 = vmul.f32 %v2104, %v2073
    %v2106 = vmul.f32 %v2105, %v2104
    %v2107 = vmul.f32 0.5, %v2106
    %v2108 = vsub.f32 1.5, %v2107
    %v2109 = vmul.f32 %v2104, %v2108
    %vm2110 = vweird.f32 %v2073
    %vm2111 = vweird.f32 %v2104
    %vm2112 = vmor %vm2110, %vm2111
    %v2113 = vsel %vm2112, %v2104, %v2109
    %v2114 = vmul.f32 %v2046, %v2083
    %v2115 = vmul.f32 %v2047, %v2093
    %v2116 = vmul.f32 %v2048, %v2103
    %v2117 = vmul.f32 %v2049, %v2113
    %v2119 = vperm.slane %v73, 0
    %v2121 = vmul.f32 %v2114, %v2119
    %v2122 = vmul.f32 %v2115, %v2119
    %v2123 = vmul.f32 %v2116, %v2119
    %v2124 = vmul.f32 %v2117, %v2119
    %v2126 = vperm.slane %v75, 0
    %v2128 = vadd.f32 %v2121, %v2126
    %v2129 = vadd.f32 %v2122, %v2126
    %v2130 = vadd.f32 %v2123, %v2126
    %v2131 = vadd.f32 %v2124, %v2126
    %v2132 = vpack.c.bf16 %v2129, %v2128
    %v2133 = vpack.c.bf16 %v2131, %v2130
    %v2135 = vperm.slane %v85, 0
    %v2141 = vunpack.c.l.b16 %v80
    %v2142 = vunpack.c.l.b16 %v81
    %v2143 = vunpack.c.l.b16 %v82
    %v2144 = vunpack.c.l.b16 %v83
    %v2145 = vpack.c.b16 %v2142, %v2141
    %v2146 = vpack.c.b16 %v2144, %v2143
    %v2150 = vsel %vm158, %v2132, 0
    %v2153 = vsel %vm158, %v2133, 0
    %2155 = vmatpush.bf16.msra.mxu0 0
    %2156 = vmatpush.bf16.msra.mxu0 0
    %2157 = vmatpush.bf16.msra.mxu0 0
    %2158 = vmatpush.bf16.msra.mxu0 0
    %2159 = vmatpush.bf16.msra.mxu0 0
    %2160 = vmatpush.bf16.msra.mxu0 0
    %2161 = vmatpush.bf16.msra.mxu0 %v2146
    %2162 = vmatpush.bf16.msra.mxu0 %v2145
    %2163 = vmatmul.bf16.gmra.mxu0 %v2150
    %v2164 = vpop.f32.mrf.mxu0
    %v2165 = vadd.f32 %v2135, %v2164
    %v2166 = vpop.f32.mrf.mxu0
    %v2167 = vadd.f32 %v2135, %v2166
    %2168 = vmatmul.bf16.gmra.mxu0 %v2153
    %v2169 = vpop.f32.mrf.mxu0
    %v2170 = vadd.f32 %v2135, %v2169
    %v2171 = vpop.f32.mrf.mxu0
    %v2172 = vadd.f32 %v2135, %v2171
    %2173 = vdwg.mxu0
    %v2174 = vmul.f32 %v2165, %v2165
    %v2175 = vmul.f32 %v2167, %v2167
    %v2176 = vmul.f32 %v2170, %v2170
    %v2177 = vmul.f32 %v2172, %v2172
    %v2178 = vmul.f32 %v2165, %v2174
    %v2179 = vmul.f32 %v2167, %v2175
    %v2180 = vmul.f32 %v2170, %v2176
    %v2181 = vmul.f32 %v2172, %v2177
    %v2182 = vmul.f32 %v2178, 0.044715
    %v2183 = vmul.f32 %v2179, 0.044715
    %v2184 = vmul.f32 %v2180, 0.044715
    %v2185 = vmul.f32 %v2181, 0.044715
    %v2186 = vadd.f32 %v2165, %v2182
    %v2187 = vadd.f32 %v2167, %v2183
    %v2188 = vadd.f32 %v2170, %v2184
    %v2189 = vadd.f32 %v2172, %v2185
    %v2190 = vmul.f32 %v2186, 0.7978846
    %v2191 = vmul.f32 %v2187, 0.7978846
    %v2192 = vmul.f32 %v2188, 0.7978846
    %v2193 = vmul.f32 %v2189, 0.7978846
    %v2194 = vtanh.pop %v2190
    %v2195 = vtanh.pop %v2191
    %v2196 = vtanh.pop %v2192
    %v2197 = vtanh.pop %v2193
    %v2198 = vadd.f32 %v2194, 1.0
    %v2199 = vadd.f32 %v2195, 1.0
    %v2200 = vadd.f32 %v2196, 1.0
    %v2201 = vadd.f32 %v2197, 1.0
    %v2202 = vmul.f32 %v2198, 0.5
    %v2203 = vmul.f32 %v2199, 0.5
    %v2204 = vmul.f32 %v2200, 0.5
    %v2205 = vmul.f32 %v2201, 0.5
    %v2206 = vmul.f32 %v2165, %v2202
    %v2207 = vmul.f32 %v2167, %v2203
    %v2208 = vmul.f32 %v2170, %v2204
    %v2209 = vmul.f32 %v2172, %v2205
    %v2210 = vpack.c.bf16 %v2207, %v2206
    %v2211 = vpack.c.bf16 %v2209, %v2208
    %v2213 = vperm.slane %v119, 0
    %v2231 = vunpack.c.l.b16 %v102
    %v2232 = vunpack.c.l.b16 %v103
    %v2233 = vunpack.c.l.b16 %v104
    %v2234 = vunpack.c.l.b16 %v105
    %v2235 = vunpack.c.l.b16 %v106
    %v2236 = vunpack.c.l.b16 %v107
    %v2237 = vunpack.c.l.b16 %v108
    %v2238 = vunpack.c.l.b16 %v109
    %v2239 = vunpack.c.l.b16 %v110
    %v2240 = vunpack.c.l.b16 %v111
    %v2241 = vunpack.c.l.b16 %v112
    %v2242 = vunpack.c.l.b16 %v113
    %v2243 = vunpack.c.l.b16 %v114
    %v2244 = vunpack.c.l.b16 %v115
    %v2245 = vunpack.c.l.b16 %v116
    %v2246 = vunpack.c.l.b16 %v117
    %v2247 = vpack.c.b16 %v2232, %v2231
    %v2248 = vpack.c.b16 %v2234, %v2233
    %v2249 = vpack.c.b16 %v2236, %v2235
    %v2250 = vpack.c.b16 %v2238, %v2237
    %v2251 = vpack.c.b16 %v2240, %v2239
    %v2252 = vpack.c.b16 %v2242, %v2241
    %v2253 = vpack.c.b16 %v2244, %v2243
    %v2254 = vpack.c.b16 %v2246, %v2245
    %2263 = vmatpush.bf16.msra.mxu0 %v2254
    %2264 = vmatpush.bf16.msra.mxu0 %v2253
    %2265 = vmatpush.bf16.msra.mxu0 %v2252
    %2266 = vmatpush.bf16.msra.mxu0 %v2251
    %2267 = vmatpush.bf16.msra.mxu0 %v2250
    %2268 = vmatpush.bf16.msra.mxu0 %v2249
    %2269 = vmatpush.bf16.msra.mxu0 %v2248
    %2270 = vmatpush.bf16.msra.mxu0 %v2247
    %2271 = vmatmul.bf16.gmra.mxu0 %v2210
    %v2272 = vpop.f32.mrf.mxu0
    %v2273 = vpop.f32.mrf.mxu0
    %v2274 = vadd.f32 %v2213, %v2273
    %2275 = vmatmul.bf16.gmra.mxu0 %v2211
    %v2276 = vpop.f32.mrf.mxu0
    %v2277 = vpop.f32.mrf.mxu0
    %v2278 = vadd.f32 %v2213, %v2277
    %2279 = vdwg.mxu0
    %v2280 = vadd.f32 %v2129, %v2274
    %v2281 = vadd.f32 %v2131, %v2278
    %v2282 = vsel %vm158, %v2280, 0.0
    %2283 = vadd.xlane.f32.xlu0 %v2282
    %v2284 = vpop.xlane.xlu0 %2283
    %v2285 = vsel %vm158, %v2281, 0.0
    %2286 = vadd.xlane.f32.xlu0 %v2285
    %v2287 = vpop.xlane.xlu0 %2286
    %v2288 = vmul.f32 %v2284, %v923
    %v2289 = vmul.f32 %v2287, %v923
    %v2290 = vsub.f32 %v2280, %v2288
    %v2291 = vsub.f32 %v2281, %v2289
    %v2292 = vmul.f32 %v2290, %v2290
    %v2293 = vmul.f32 %v2291, %v2291
    %v2294 = vsel %vm158, %v2292, 0.0
    %2295 = vadd.xlane.f32.xlu0 %v2294
    %v2296 = vpop.xlane.xlu0 %2295
    %v2297 = vsel %vm158, %v2293, 0.0
    %2298 = vadd.xlane.f32.xlu0 %v2297
    %v2299 = vpop.xlane.xlu0 %2298
    %v2300 = vmul.f32 %v2296, %v923
    %v2301 = vmul.f32 %v2299, %v923
    %v2302 = vadd.f32 %v2300, 1e-12
    %v2303 = vadd.f32 %v2301, 1e-12
    %v2304 = vrsqrt.pop %v2302
    %v2305 = vmul.f32 %v2304, %v2302
    %v2306 = vmul.f32 %v2305, %v2304
    %v2307 = vmul.f32 0.5, %v2306
    %v2308 = vsub.f32 1.5, %v2307
    %v2309 = vmul.f32 %v2304, %v2308
    %vm2310 = vweird.f32 %v2302
    %vm2311 = vweird.f32 %v2304
    %vm2312 = vmor %vm2310, %vm2311
    %v2313 = vsel %vm2312, %v2304, %v2309
    %v2314 = vrsqrt.pop %v2303
    %v2315 = vmul.f32 %v2314, %v2303
    %v2316 = vmul.f32 %v2315, %v2314
    %v2317 = vmul.f32 0.5, %v2316
    %v2318 = vsub.f32 1.5, %v2317
    %v2319 = vmul.f32 %v2314, %v2318
    %vm2320 = vweird.f32 %v2303
    %vm2321 = vweird.f32 %v2314
    %vm2322 = vmor %vm2320, %vm2321
    %v2323 = vsel %vm2322, %v2314, %v2319
    %v2324 = vmul.f32 %v2290, %v2313
    %v2325 = vmul.f32 %v2291, %v2323
    %v2327 = vperm.slane %v121, 0
    %v2329 = vmul.f32 %v2324, %v2327
    %v2330 = vmul.f32 %v2325, %v2327
    %v2332 = vperm.slane %v123, 0
    %v2334 = vadd.f32 %v2329, %v2332
    %v2335 = vadd.f32 %v2330, %v2332
    %2336 = vst.msk [vmem:[#allocation2] sm:$0xff] %vm158, %v2334
    %2337 = vst.msk [vmem:[#allocation2 + $0x8] sm:$0xff] %vm158, %v2335
    // Predicated region
    $region62: #{tpu_custom_call.1} parent=1 // pred_check
      _
    $region63: #{tpu_custom_call.1} parent=1 // pred_check_branch
      %2339 = sbr.rel (0) target = $region65
    $region64: #{tpu_custom_call.1} parent=1 // pred_region
      %2341 = vsyncadd [#allocation3], 0
      %s2342 = sshll.u32 [#allocation2], 4
      %s2343 = int_to_ptr.vmem [resolvable:$true] %s2342
      %s2344 = sshll.u32 %s15, 4
      %s2345 = int_to_ptr.hbm [resolvable:$true] %s2344
      %2350 = dma.vmem_to_hbm [thread:$0]  %s2343, 256, %s2345, [#allocation3], 128, 128, 8
    $region65: #{tpu_custom_call.1} parent=1 // pred_fallthru
      _
    // Predicated region
    $region66: #{tpu_custom_call.1} parent=1 // pred_check
      _
    $region67: #{tpu_custom_call.1} parent=1 // pred_check_branch
      %2352 = sbr.rel (0) target = $region69
    $region68: #{tpu_custom_call.1} parent=1 // pred_region
      %2354 = dma.done [#allocation3], 256
    $region69: #{tpu_custom_call.1} parent=1 // pred_fallthru
      _
    %2355 = vsyncpa [#allocation3], 1

</llo_original>
